<compile_context>
chip_gen: v6e
topology: v6e:2x2x1
jax: 0.10.0
libtpu: 0.0.40
codegen_flags: <defaults>
</compile_context>

<pallas_src>
import numpy as np
import jax
import jax.numpy as jnp
from jax import lax
from jax.experimental import pallas as pl
from jax.experimental.pallas import tpu as pltpu

H = W = 7
HW = H * W
C_IN = 576
C_MID = 128
C_OUT = 32
N_TAPS = 9
EPS = 1e-5


def _fused_kernel(x_ref, w1_ref, g_ref, b_ref, w2_ref, s_ref, o_ref):
    # ---- relu92 + conv2d92 (1x1, no bias): one bf16 MXU matmul, channel-major ----
    x = jnp.maximum(x_ref[...], 0.0).astype(jnp.bfloat16)               # (576, 49)
    y = jnp.dot(w1_ref[...], x, preferred_element_type=jnp.float32)     # (128, 49) f32

    # ---- batchnorm2d93 (training-mode batch stats, biased variance) ----
    # both sums from a single fused lane reduction over [y ; y*y]
    stat = jnp.sum(jnp.concatenate([y, y * y], axis=0),
                   axis=1, keepdims=True) * (1.0 / HW)                  # (256, 1)
    mean = stat[:C_MID]                                                  # (128, 1)
    var = stat[C_MID:] - mean * mean                                     # (128, 1)
    scale = g_ref[...] * lax.rsqrt(var + EPS)                            # (128, 1)
    bias = b_ref[...] - mean * scale                                     # (128, 1)

    # ---- relu93 fused with the affine normalize; single cast to bf16 ----
    z = jnp.maximum(y * scale + bias, 0.0).astype(jnp.bfloat16)          # (128, 49)

    # ---- conv2d93 (3x3, pad=1, no bias) ----
    # per-tap partial products stacked along sublanes:
    #   u[k*32 + o, q] = sum_c W2[o, c, tap k] * z[c, q]
    u = jnp.dot(w2_ref[...], z, preferred_element_type=jnp.float32)      # (288, 49) f32
    # apply each tap's spatial shift (+ zero-padding mask) as a matmul with a
    # constant 0/1 select matrix; accumulate the NCHW-flat output exactly in f32
    out = jnp.dot(u[0:C_OUT, :], s_ref[0],
                  preferred_element_type=jnp.float32)                    # (32, 49)
    for k in range(1, N_TAPS):                                           # static unroll
        out = out + jnp.dot(u[k * C_OUT:(k + 1) * C_OUT, :], s_ref[k],
                            preferred_element_type=jnp.float32)
    o_ref[...] = out                                                     # (32, 49) f32


def prepare_params(w1_oihw, gamma, beta, w2_oihw):
    """One-time weight / shift-matrix layout preparation (outside the per-call path)."""
    c_mid, c_in = w1_oihw.shape[0], w1_oihw.shape[1]
    c_out = w2_oihw.shape[0]
    # 1x1 conv weight -> (Cmid, Cin) bf16 (pure reshape; channel-major matmul LHS)
    w1 = w1_oihw.reshape(c_mid, c_in).astype(jnp.bfloat16)
    # 3x3 conv weight -> (9*Cout, Cmid) bf16, rows ordered [tap, out_channel]
    w2 = jnp.transpose(w2_oihw, (2, 3, 0, 1)).reshape(N_TAPS * c_out, c_mid)
    w2 = w2.astype(jnp.bfloat16)
    g = gamma.reshape(c_mid, 1).astype(jnp.float32)
    b = beta.reshape(c_mid, 1).astype(jnp.float32)
    # 0/1 shift-select matrices: (z @ s[k])[c, p] == z[c, p + dy*W + dx], with
    # zeros wherever the 3x3 tap falls outside the zero-padded 7x7 image.
    s = np.zeros((N_TAPS, HW, HW), np.float32)
    for k in range(N_TAPS):
        dy, dx = k // 3 - 1, k % 3 - 1
        for p in range(HW):
            yy, xx = p // W, p % W
            if 0 <= yy + dy < H and 0 <= xx + dx < W:
                s[k, p + dy * W + dx, p] = 1.0
    return w1, g, b, w2, jnp.asarray(s)


@jax.jit
def model_forward(x_nchw, w1, g, b, w2, s):
    n, c_in, h, w = x_nchw.shape
    # free reshape: NCHW (1,576,7,7) -> channel-major (576,49); no transpose dispatch
    x = x_nchw.reshape(c_in, h * w)
    out = pl.pallas_call(
        _fused_kernel,
        out_shape=jax.ShapeDtypeStruct((C_OUT, h * w), jnp.float32),
        in_specs=[pl.BlockSpec(memory_space=pltpu.MemorySpace.VMEM)] * 6,
        out_specs=pl.BlockSpec(memory_space=pltpu.MemorySpace.VMEM),
    )(x, w1, g, b, w2, s)
    # free reshape back to NCHW-flat layout
    return out.reshape(n, C_OUT, h, w)                                   # (1, 32, 7, 7)


def _reference(x, w1_oihw, gamma, beta, w2_oihw):
    x = jnp.maximum(x, 0.0)
    y = lax.conv_general_dilated(x, w1_oihw, (1, 1), "VALID",
                                 dimension_numbers=("NCHW", "OIHW", "NCHW"))
    mean = jnp.mean(y, axis=(0, 2, 3), keepdims=True)
    var = jnp.mean((y - mean) ** 2, axis=(0, 2, 3), keepdims=True)
    z = (y - mean) * lax.rsqrt(var + EPS)
    z = z * gamma.reshape(1, -1, 1, 1) + beta.reshape(1, -1, 1, 1)
    z = jnp.maximum(z, 0.0)
    return lax.conv_general_dilated(z, w2_oihw, (1, 1), ((1, 1), (1, 1)),
                                    dimension_numbers=("NCHW", "OIHW", "NCHW"))


if __name__ == "__main__":
    key = jax.random.PRNGKey(0)
    k1, k2, k3 = jax.random.split(key, 3)

    # deterministic synthetic input + parameters (shapes from the module)
    x = jax.random.normal(k1, (1, C_IN, H, W), jnp.float32)
    w1_oihw = jax.random.normal(k2, (C_MID, C_IN, 1, 1), jnp.float32) * 0.05
    w2_oihw = jax.random.normal(k3, (C_OUT, C_MID, 3, 3), jnp.float32) * 0.05
    gamma = jnp.ones((C_MID,), jnp.float32)    # BatchNorm2d default affine init
    beta = jnp.zeros((C_MID,), jnp.float32)

    # one-time weight prep (not part of the per-forward path)
    params = prepare_params(w1_oihw, gamma, beta, w2_oihw)
    params = jax.block_until_ready(params)
    w1, g, b, w2, s = params

    out = model_forward(x, w1, g, b, w2, s)
    jax.block_until_ready(out)
    assert out.shape == (1, C_OUT, H, W) and out.dtype == jnp.float32

    ref = _reference(x, w1_oihw, gamma, beta, w2_oihw)
    if not jnp.allclose(out, ref, rtol=3e-2, atol=3e-2):
        raise AssertionError("Pallas kernel does not match JAX reference")

    print("KERNEL_OK")
</pallas_src>

<mosaic_0001>
module attributes {stable_mosaic.version = 11 : i64} {
  func.func @_fused_kernel(%arg0: memref<576x49xf32, #tpu.memory_space<vmem>>, %arg1: memref<128x576xbf16, #tpu.memory_space<vmem>>, %arg2: memref<128x1xf32, #tpu.memory_space<vmem>>, %arg3: memref<128x1xf32, #tpu.memory_space<vmem>>, %arg4: memref<288x128xbf16, #tpu.memory_space<vmem>>, %arg5: memref<9x49x49xf32, #tpu.memory_space<vmem>>, %arg6: memref<32x49xf32, #tpu.memory_space<vmem>>) attributes {dimension_semantics = [], scalar_prefetch = 0 : i64, scratch_operands = 0 : i64, tpu.core_type = #tpu.core_type<tc>} {
    %c0 = arith.constant 0 : index
    %c0_0 = arith.constant 0 : index
    %0 = vector.load %arg0[%c0, %c0_0] : memref<576x49xf32, #tpu.memory_space<vmem>>, vector<576x49xf32>
    %cst = arith.constant 0.000000e+00 : f32
    %1 = vector.broadcast %cst : f32 to vector<576x49xf32>
    %2 = arith.maximumf %0, %1 : vector<576x49xf32>
    %3 = arith.truncf %2 : vector<576x49xf32> to vector<576x49xbf16>
    %c0_1 = arith.constant 0 : index
    %c0_2 = arith.constant 0 : index
    %4 = vector.load %arg1[%c0_1, %c0_2] : memref<128x576xbf16, #tpu.memory_space<vmem>>, vector<128x576xbf16>
    %cst_3 = arith.constant dense<0.000000e+00> : vector<128x49xf32>
    %5 = tpu.matmul %4, %3, %cst_3 {dimension_numbers = #tpu.dot_dimension_numbers<[1], [0], [0], [1], [0, 0, 1, 1], [], []>} : vector<128x576xbf16>, vector<576x49xbf16>, vector<128x49xf32> -> vector<128x49xf32>
    %6 = arith.mulf %5, %5 : vector<128x49xf32>
    %7 = tpu.concatenate %5, %6 in 0 : vector<128x49xf32>, vector<128x49xf32> -> vector<256x49xf32>
    %cst_4 = arith.constant dense<0.000000e+00> : vector<256xf32>
    %8 = vector.multi_reduction <add>, %7, %cst_4 [1] : vector<256x49xf32> to vector<256xf32>
    %9 = vector.shape_cast %8 : vector<256xf32> to vector<256x1xf32>
    %cst_5 = arith.constant 0.0204081628 : f32
    %10 = vector.broadcast %cst_5 : f32 to vector<256x1xf32>
    %11 = arith.mulf %9, %10 : vector<256x1xf32>
    %12 = vector.extract_strided_slice %11 {offsets = [0, 0], sizes = [128, 1], strides = [1, 1]} : vector<256x1xf32> to vector<128x1xf32>
    %13 = vector.extract_strided_slice %11 {offsets = [128, 0], sizes = [128, 1], strides = [1, 1]} : vector<256x1xf32> to vector<128x1xf32>
    %14 = arith.mulf %12, %12 : vector<128x1xf32>
    %15 = arith.subf %13, %14 : vector<128x1xf32>
    %c0_6 = arith.constant 0 : index
    %c0_7 = arith.constant 0 : index
    %16 = vector.load %arg2[%c0_6, %c0_7] : memref<128x1xf32, #tpu.memory_space<vmem>>, vector<128x1xf32>
    %cst_8 = arith.constant 9.99999974E-6 : f32
    %17 = vector.broadcast %cst_8 : f32 to vector<128x1xf32>
    %18 = arith.addf %15, %17 : vector<128x1xf32>
    %19 = math.rsqrt %18 : vector<128x1xf32>
    %20 = arith.mulf %16, %19 : vector<128x1xf32>
    %c0_9 = arith.constant 0 : index
    %c0_10 = arith.constant 0 : index
    %21 = vector.load %arg3[%c0_9, %c0_10] : memref<128x1xf32, #tpu.memory_space<vmem>>, vector<128x1xf32>
    %22 = arith.mulf %12, %20 : vector<128x1xf32>
    %23 = arith.subf %21, %22 : vector<128x1xf32>
    %24 = vector.broadcast %20 : vector<128x1xf32> to vector<128x49xf32>
    %25 = arith.mulf %5, %24 : vector<128x49xf32>
    %26 = vector.broadcast %23 : vector<128x1xf32> to vector<128x49xf32>
    %27 = arith.addf %25, %26 : vector<128x49xf32>
    %cst_11 = arith.constant 0.000000e+00 : f32
    %28 = vector.broadcast %cst_11 : f32 to vector<128x49xf32>
    %29 = arith.maximumf %27, %28 : vector<128x49xf32>
    %30 = arith.truncf %29 : vector<128x49xf32> to vector<128x49xbf16>
    %c0_12 = arith.constant 0 : index
    %c0_13 = arith.constant 0 : index
    %31 = vector.load %arg4[%c0_12, %c0_13] : memref<288x128xbf16, #tpu.memory_space<vmem>>, vector<288x128xbf16>
    %cst_14 = arith.constant dense<0.000000e+00> : vector<288x49xf32>
    %32 = tpu.matmul %31, %30, %cst_14 {dimension_numbers = #tpu.dot_dimension_numbers<[1], [0], [0], [1], [0, 0, 1, 1], [], []>} : vector<288x128xbf16>, vector<128x49xbf16>, vector<288x49xf32> -> vector<288x49xf32>
    %33 = vector.extract_strided_slice %32 {offsets = [0, 0], sizes = [32, 49], strides = [1, 1]} : vector<288x49xf32> to vector<32x49xf32>
    %c0_15 = arith.constant 0 : index
    %c0_16 = arith.constant 0 : index
    %c0_17 = arith.constant 0 : index
    %34 = vector.load %arg5[%c0_15, %c0_16, %c0_17] : memref<9x49x49xf32, #tpu.memory_space<vmem>>, vector<1x49x49xf32>
    %35 = vector.shape_cast %34 : vector<1x49x49xf32> to vector<49x49xf32>
    %cst_18 = arith.constant dense<0.000000e+00> : vector<32x49xf32>
    %36 = tpu.matmul %33, %35, %cst_18 {dimension_numbers = #tpu.dot_dimension_numbers<[1], [0], [0], [1], [0, 0, 1, 1], [], []>} : vector<32x49xf32>, vector<49x49xf32>, vector<32x49xf32> -> vector<32x49xf32>
    %37 = vector.extract_strided_slice %32 {offsets = [32, 0], sizes = [32, 49], strides = [1, 1]} : vector<288x49xf32> to vector<32x49xf32>
    %c1 = arith.constant 1 : index
    %c0_19 = arith.constant 0 : index
    %c0_20 = arith.constant 0 : index
    %38 = vector.load %arg5[%c1, %c0_19, %c0_20] : memref<9x49x49xf32, #tpu.memory_space<vmem>>, vector<1x49x49xf32>
    %39 = vector.shape_cast %38 : vector<1x49x49xf32> to vector<49x49xf32>
    %cst_21 = arith.constant dense<0.000000e+00> : vector<32x49xf32>
    %40 = tpu.matmul %37, %39, %cst_21 {dimension_numbers = #tpu.dot_dimension_numbers<[1], [0], [0], [1], [0, 0, 1, 1], [], []>} : vector<32x49xf32>, vector<49x49xf32>, vector<32x49xf32> -> vector<32x49xf32>
    %41 = arith.addf %36, %40 : vector<32x49xf32>
    %42 = vector.extract_strided_slice %32 {offsets = [64, 0], sizes = [32, 49], strides = [1, 1]} : vector<288x49xf32> to vector<32x49xf32>
    %c2 = arith.constant 2 : index
    %c0_22 = arith.constant 0 : index
    %c0_23 = arith.constant 0 : index
    %43 = vector.load %arg5[%c2, %c0_22, %c0_23] : memref<9x49x49xf32, #tpu.memory_space<vmem>>, vector<1x49x49xf32>
    %44 = vector.shape_cast %43 : vector<1x49x49xf32> to vector<49x49xf32>
    %cst_24 = arith.constant dense<0.000000e+00> : vector<32x49xf32>
    %45 = tpu.matmul %42, %44, %cst_24 {dimension_numbers = #tpu.dot_dimension_numbers<[1], [0], [0], [1], [0, 0, 1, 1], [], []>} : vector<32x49xf32>, vector<49x49xf32>, vector<32x49xf32> -> vector<32x49xf32>
    %46 = arith.addf %41, %45 : vector<32x49xf32>
    %47 = vector.extract_strided_slice %32 {offsets = [96, 0], sizes = [32, 49], strides = [1, 1]} : vector<288x49xf32> to vector<32x49xf32>
    %c3 = arith.constant 3 : index
    %c0_25 = arith.constant 0 : index
    %c0_26 = arith.constant 0 : index
    %48 = vector.load %arg5[%c3, %c0_25, %c0_26] : memref<9x49x49xf32, #tpu.memory_space<vmem>>, vector<1x49x49xf32>
    %49 = vector.shape_cast %48 : vector<1x49x49xf32> to vector<49x49xf32>
    %cst_27 = arith.constant dense<0.000000e+00> : vector<32x49xf32>
    %50 = tpu.matmul %47, %49, %cst_27 {dimension_numbers = #tpu.dot_dimension_numbers<[1], [0], [0], [1], [0, 0, 1, 1], [], []>} : vector<32x49xf32>, vector<49x49xf32>, vector<32x49xf32> -> vector<32x49xf32>
    %51 = arith.addf %46, %50 : vector<32x49xf32>
    %52 = vector.extract_strided_slice %32 {offsets = [128, 0], sizes = [32, 49], strides = [1, 1]} : vector<288x49xf32> to vector<32x49xf32>
    %c4 = arith.constant 4 : index
    %c0_28 = arith.constant 0 : index
    %c0_29 = arith.constant 0 : index
    %53 = vector.load %arg5[%c4, %c0_28, %c0_29] : memref<9x49x49xf32, #tpu.memory_space<vmem>>, vector<1x49x49xf32>
    %54 = vector.shape_cast %53 : vector<1x49x49xf32> to vector<49x49xf32>
    %cst_30 = arith.constant dense<0.000000e+00> : vector<32x49xf32>
    %55 = tpu.matmul %52, %54, %cst_30 {dimension_numbers = #tpu.dot_dimension_numbers<[1], [0], [0], [1], [0, 0, 1, 1], [], []>} : vector<32x49xf32>, vector<49x49xf32>, vector<32x49xf32> -> vector<32x49xf32>
    %56 = arith.addf %51, %55 : vector<32x49xf32>
    %57 = vector.extract_strided_slice %32 {offsets = [160, 0], sizes = [32, 49], strides = [1, 1]} : vector<288x49xf32> to vector<32x49xf32>
    %c5 = arith.constant 5 : index
    %c0_31 = arith.constant 0 : index
    %c0_32 = arith.constant 0 : index
    %58 = vector.load %arg5[%c5, %c0_31, %c0_32] : memref<9x49x49xf32, #tpu.memory_space<vmem>>, vector<1x49x49xf32>
    %59 = vector.shape_cast %58 : vector<1x49x49xf32> to vector<49x49xf32>
    %cst_33 = arith.constant dense<0.000000e+00> : vector<32x49xf32>
    %60 = tpu.matmul %57, %59, %cst_33 {dimension_numbers = #tpu.dot_dimension_numbers<[1], [0], [0], [1], [0, 0, 1, 1], [], []>} : vector<32x49xf32>, vector<49x49xf32>, vector<32x49xf32> -> vector<32x49xf32>
    %61 = arith.addf %56, %60 : vector<32x49xf32>
    %62 = vector.extract_strided_slice %32 {offsets = [192, 0], sizes = [32, 49], strides = [1, 1]} : vector<288x49xf32> to vector<32x49xf32>
    %c6 = arith.constant 6 : index
    %c0_34 = arith.constant 0 : index
    %c0_35 = arith.constant 0 : index
    %63 = vector.load %arg5[%c6, %c0_34, %c0_35] : memref<9x49x49xf32, #tpu.memory_space<vmem>>, vector<1x49x49xf32>
    %64 = vector.shape_cast %63 : vector<1x49x49xf32> to vector<49x49xf32>
    %cst_36 = arith.constant dense<0.000000e+00> : vector<32x49xf32>
    %65 = tpu.matmul %62, %64, %cst_36 {dimension_numbers = #tpu.dot_dimension_numbers<[1], [0], [0], [1], [0, 0, 1, 1], [], []>} : vector<32x49xf32>, vector<49x49xf32>, vector<32x49xf32> -> vector<32x49xf32>
    %66 = arith.addf %61, %65 : vector<32x49xf32>
    %67 = vector.extract_strided_slice %32 {offsets = [224, 0], sizes = [32, 49], strides = [1, 1]} : vector<288x49xf32> to vector<32x49xf32>
    %c7 = arith.constant 7 : index
    %c0_37 = arith.constant 0 : index
    %c0_38 = arith.constant 0 : index
    %68 = vector.load %arg5[%c7, %c0_37, %c0_38] : memref<9x49x49xf32, #tpu.memory_space<vmem>>, vector<1x49x49xf32>
    %69 = vector.shape_cast %68 : vector<1x49x49xf32> to vector<49x49xf32>
    %cst_39 = arith.constant dense<0.000000e+00> : vector<32x49xf32>
    %70 = tpu.matmul %67, %69, %cst_39 {dimension_numbers = #tpu.dot_dimension_numbers<[1], [0], [0], [1], [0, 0, 1, 1], [], []>} : vector<32x49xf32>, vector<49x49xf32>, vector<32x49xf32> -> vector<32x49xf32>
    %71 = arith.addf %66, %70 : vector<32x49xf32>
    %72 = vector.extract_strided_slice %32 {offsets = [256, 0], sizes = [32, 49], strides = [1, 1]} : vector<288x49xf32> to vector<32x49xf32>
    %c8 = arith.constant 8 : index
    %c0_40 = arith.constant 0 : index
    %c0_41 = arith.constant 0 : index
    %73 = vector.load %arg5[%c8, %c0_40, %c0_41] : memref<9x49x49xf32, #tpu.memory_space<vmem>>, vector<1x49x49xf32>
    %74 = vector.shape_cast %73 : vector<1x49x49xf32> to vector<49x49xf32>
    %cst_42 = arith.constant dense<0.000000e+00> : vector<32x49xf32>
    %75 = tpu.matmul %72, %74, %cst_42 {dimension_numbers = #tpu.dot_dimension_numbers<[1], [0], [0], [1], [0, 0, 1, 1], [], []>} : vector<32x49xf32>, vector<49x49xf32>, vector<32x49xf32> -> vector<32x49xf32>
    %76 = arith.addf %71, %75 : vector<32x49xf32>
    %c0_43 = arith.constant 0 : index
    %c0_44 = arith.constant 0 : index
    %77 = vector.load %arg6[%c0_43, %c0_44] : memref<32x49xf32, #tpu.memory_space<vmem>>, vector<32x49xf32>
    tpu.vector_store %arg6[%c0_43, %c0_44], %76 {strides = array<i32>} : memref<32x49xf32, #tpu.memory_space<vmem>>, vector<32x49xf32>,
    return
  }
}

</mosaic_0001>

<llo_original>
// kernel: model_forward.1
$region0: #{model_forward.1}
  #allocation0 [shape = 'u32[]', space=smem, size = 0x4, offset = 0x4, fixed_abs, tag = 'smem constant byte address 0x4 - core index']
  #allocation1 [shape = 'u32[144,128]{1,0:T(1,128)}', space=vmem, size = 0x12000, scoped, tag = 'internal scratch']
  %s0 = inlined_call_operand.vmem [shape: f32[576,49], index: 0, kind: input, shape index: {}]
  %s1 = inlined_call_operand.vmem [shape: bf16[128,576], index: 1, kind: input, shape index: {}]
  %s2 = inlined_call_operand.vmem [shape: f32[128,1], index: 2, kind: input, shape index: {}]
  %s3 = inlined_call_operand.vmem [shape: f32[128,1], index: 3, kind: input, shape index: {}]
  %s4 = inlined_call_operand.vmem [shape: bf16[288,128], index: 4, kind: input, shape index: {}]
  %s5 = inlined_call_operand.vmem [shape: f32[9,49,49], index: 5, kind: input, shape index: {}]
  %s6 = inlined_call_operand.vmem [shape: f32[32,49], index: 6, kind: output, shape index: {}]
  %s7 = sld [smem:[#allocation0]]
  $region34: #{model_forward.1} parent=0
    _
  %s9 = ssub.s32 1, %s7
  %s10 = scalar_select 0, %s9, %s7
  // Predicated region
  $region2: #{model_forward.1} parent=0 // pred_check
    _
  $region3: #{model_forward.1} parent=0 // pred_check_branch
    %12 = sbr.rel (0) target = $region5
  $region4: #{model_forward.1} parent=0 // pred_region
    _
  $region5: #{model_forward.1} parent=0 // pred_fallthru
    _
  // Predicated region
  $region6: #{model_forward.1} parent=0 // pred_check
    _
  $region7: #{model_forward.1} parent=0 // pred_check_branch
    %14 = sbr.rel (0) target = $region9
  $region8: #{model_forward.1} parent=0 // pred_region
    _
  $region9: #{model_forward.1} parent=0 // pred_fallthru
    _
  // Predicated region
  $region10: #{model_forward.1} parent=0 // pred_check
    _
  $region11: #{model_forward.1} parent=0 // pred_check_branch
    %16 = sbr.rel (0) target = $region13
  $region12: #{model_forward.1} parent=0 // pred_region
    _
  $region13: #{model_forward.1} parent=0 // pred_fallthru
    _
  // Predicated region
  $region14: #{model_forward.1} parent=0 // pred_check
    _
  $region15: #{model_forward.1} parent=0 // pred_check_branch
    %18 = sbr.rel (0) target = $region17
  $region16: #{model_forward.1} parent=0 // pred_region
    _
  $region17: #{model_forward.1} parent=0 // pred_fallthru
    _
  // Predicated region
  $region18: #{model_forward.1} parent=0 // pred_check
    _
  $region19: #{model_forward.1} parent=0 // pred_check_branch
    %20 = sbr.rel (0) target = $region21
  $region20: #{model_forward.1} parent=0 // pred_region
    _
  $region21: #{model_forward.1} parent=0 // pred_fallthru
    _
  // Predicated region
  $region22: #{model_forward.1} parent=0 // pred_check
    _
  $region23: #{model_forward.1} parent=0 // pred_check_branch
    %22 = sbr.rel (0) target = $region25
  $region24: #{model_forward.1} parent=0 // pred_region
    _
  $region25: #{model_forward.1} parent=0 // pred_fallthru
    _
  %v24 = vld [vmem:[%s0] sm:$0xff]
  %v25 = vld [vmem:[%s0 + $0x8] sm:$0xff]
  %v26 = vld [vmem:[%s0 + $0x10] sm:$0xff]
  %v27 = vld [vmem:[%s0 + $0x18] sm:$0xff]
  %v28 = vld [vmem:[%s0 + $0x20] sm:$0xff]
  %v29 = vld [vmem:[%s0 + $0x28] sm:$0xff]
  %v30 = vld [vmem:[%s0 + $0x30] sm:$0xff]
  %v31 = vld [vmem:[%s0 + $0x38] sm:$0xff]
  %v32 = vld [vmem:[%s0 + $0x40] sm:$0xff]
  %v33 = vld [vmem:[%s0 + $0x48] sm:$0xff]
  %v34 = vld [vmem:[%s0 + $0x50] sm:$0xff]
  %v35 = vld [vmem:[%s0 + $0x58] sm:$0xff]
  %v36 = vld [vmem:[%s0 + $0x60] sm:$0xff]
  %v37 = vld [vmem:[%s0 + $0x68] sm:$0xff]
  %v38 = vld [vmem:[%s0 + $0x70] sm:$0xff]
  %v39 = vld [vmem:[%s0 + $0x78] sm:$0xff]
  %v40 = vld [vmem:[%s0 + $0x80] sm:$0xff]
  %v41 = vld [vmem:[%s0 + $0x88] sm:$0xff]
  %v42 = vld [vmem:[%s0 + $0x90] sm:$0xff]
  %v43 = vld [vmem:[%s0 + $0x98] sm:$0xff]
  %v44 = vld [vmem:[%s0 + $0xa0] sm:$0xff]
  %v45 = vld [vmem:[%s0 + $0xa8] sm:$0xff]
  %v46 = vld [vmem:[%s0 + $0xb0] sm:$0xff]
  %v47 = vld [vmem:[%s0 + $0xb8] sm:$0xff]
  %v48 = vld [vmem:[%s0 + $0xc0] sm:$0xff]
  %v49 = vld [vmem:[%s0 + $0xc8] sm:$0xff]
  %v50 = vld [vmem:[%s0 + $0xd0] sm:$0xff]
  %v51 = vld [vmem:[%s0 + $0xd8] sm:$0xff]
  %v52 = vld [vmem:[%s0 + $0xe0] sm:$0xff]
  %v53 = vld [vmem:[%s0 + $0xe8] sm:$0xff]
  %v54 = vld [vmem:[%s0 + $0xf0] sm:$0xff]
  %v55 = vld [vmem:[%s0 + $0xf8] sm:$0xff]
  %v56 = vld [vmem:[%s0 + $0x100] sm:$0xff]
  %v57 = vld [vmem:[%s0 + $0x108] sm:$0xff]
  %v58 = vld [vmem:[%s0 + $0x110] sm:$0xff]
  %v59 = vld [vmem:[%s0 + $0x118] sm:$0xff]
  %v60 = vld [vmem:[%s0 + $0x120] sm:$0xff]
  %v61 = vld [vmem:[%s0 + $0x128] sm:$0xff]
  %v62 = vld [vmem:[%s0 + $0x130] sm:$0xff]
  %v63 = vld [vmem:[%s0 + $0x138] sm:$0xff]
  %v64 = vld [vmem:[%s0 + $0x140] sm:$0xff]
  %v65 = vld [vmem:[%s0 + $0x148] sm:$0xff]
  %v66 = vld [vmem:[%s0 + $0x150] sm:$0xff]
  %v67 = vld [vmem:[%s0 + $0x158] sm:$0xff]
  %v68 = vld [vmem:[%s0 + $0x160] sm:$0xff]
  %v69 = vld [vmem:[%s0 + $0x168] sm:$0xff]
  %v70 = vld [vmem:[%s0 + $0x170] sm:$0xff]
  %v71 = vld [vmem:[%s0 + $0x178] sm:$0xff]
  %v72 = vld [vmem:[%s0 + $0x180] sm:$0xff]
  %v73 = vld [vmem:[%s0 + $0x188] sm:$0xff]
  %v74 = vld [vmem:[%s0 + $0x190] sm:$0xff]
  %v75 = vld [vmem:[%s0 + $0x198] sm:$0xff]
  %v76 = vld [vmem:[%s0 + $0x1a0] sm:$0xff]
  %v77 = vld [vmem:[%s0 + $0x1a8] sm:$0xff]
  %v78 = vld [vmem:[%s0 + $0x1b0] sm:$0xff]
  %v79 = vld [vmem:[%s0 + $0x1b8] sm:$0xff]
  %v80 = vld [vmem:[%s0 + $0x1c0] sm:$0xff]
  %v81 = vld [vmem:[%s0 + $0x1c8] sm:$0xff]
  %v82 = vld [vmem:[%s0 + $0x1d0] sm:$0xff]
  %v83 = vld [vmem:[%s0 + $0x1d8] sm:$0xff]
  %v84 = vld [vmem:[%s0 + $0x1e0] sm:$0xff]
  %v85 = vld [vmem:[%s0 + $0x1e8] sm:$0xff]
  %v86 = vld [vmem:[%s0 + $0x1f0] sm:$0xff]
  %v87 = vld [vmem:[%s0 + $0x1f8] sm:$0xff]
  %v88 = vld [vmem:[%s0 + $0x200] sm:$0xff]
  %v89 = vld [vmem:[%s0 + $0x208] sm:$0xff]
  %v90 = vld [vmem:[%s0 + $0x210] sm:$0xff]
  %v91 = vld [vmem:[%s0 + $0x218] sm:$0xff]
  %v92 = vld [vmem:[%s0 + $0x220] sm:$0xff]
  %v93 = vld [vmem:[%s0 + $0x228] sm:$0xff]
  %v94 = vld [vmem:[%s0 + $0x230] sm:$0xff]
  %v95 = vld [vmem:[%s0 + $0x238] sm:$0xff]
  %v96 = vmax.f32 %v24, 0.0
  %v97 = vmax.f32 %v25, 0.0
  %v98 = vmax.f32 %v26, 0.0
  %v99 = vmax.f32 %v27, 0.0
  %v100 = vmax.f32 %v28, 0.0
  %v101 = vmax.f32 %v29, 0.0
  %v102 = vmax.f32 %v30, 0.0
  %v103 = vmax.f32 %v31, 0.0
  %v104 = vmax.f32 %v32, 0.0
  %v105 = vmax.f32 %v33, 0.0
  %v106 = vmax.f32 %v34, 0.0
  %v107 = vmax.f32 %v35, 0.0
  %v108 = vmax.f32 %v36, 0.0
  %v109 = vmax.f32 %v37, 0.0
  %v110 = vmax.f32 %v38, 0.0
  %v111 = vmax.f32 %v39, 0.0
  %v112 = vmax.f32 %v40, 0.0
  %v113 = vmax.f32 %v41, 0.0
  %v114 = vmax.f32 %v42, 0.0
  %v115 = vmax.f32 %v43, 0.0
  %v116 = vmax.f32 %v44, 0.0
  %v117 = vmax.f32 %v45, 0.0
  %v118 = vmax.f32 %v46, 0.0
  %v119 = vmax.f32 %v47, 0.0
  %v120 = vmax.f32 %v48, 0.0
  %v121 = vmax.f32 %v49, 0.0
  %v122 = vmax.f32 %v50, 0.0
  %v123 = vmax.f32 %v51, 0.0
  %v124 = vmax.f32 %v52, 0.0
  %v125 = vmax.f32 %v53, 0.0
  %v126 = vmax.f32 %v54, 0.0
  %v127 = vmax.f32 %v55, 0.0
  %v128 = vmax.f32 %v56, 0.0
  %v129 = vmax.f32 %v57, 0.0
  %v130 = vmax.f32 %v58, 0.0
  %v131 = vmax.f32 %v59, 0.0
  %v132 = vmax.f32 %v60, 0.0
  %v133 = vmax.f32 %v61, 0.0
  %v134 = vmax.f32 %v62, 0.0
  %v135 = vmax.f32 %v63, 0.0
  %v136 = vmax.f32 %v64, 0.0
  %v137 = vmax.f32 %v65, 0.0
  %v138 = vmax.f32 %v66, 0.0
  %v139 = vmax.f32 %v67, 0.0
  %v140 = vmax.f32 %v68, 0.0
  %v141 = vmax.f32 %v69, 0.0
  %v142 = vmax.f32 %v70, 0.0
  %v143 = vmax.f32 %v71, 0.0
  %v144 = vmax.f32 %v72, 0.0
  %v145 = vmax.f32 %v73, 0.0
  %v146 = vmax.f32 %v74, 0.0
  %v147 = vmax.f32 %v75, 0.0
  %v148 = vmax.f32 %v76, 0.0
  %v149 = vmax.f32 %v77, 0.0
  %v150 = vmax.f32 %v78, 0.0
  %v151 = vmax.f32 %v79, 0.0
  %v152 = vmax.f32 %v80, 0.0
  %v153 = vmax.f32 %v81, 0.0
  %v154 = vmax.f32 %v82, 0.0
  %v155 = vmax.f32 %v83, 0.0
  %v156 = vmax.f32 %v84, 0.0
  %v157 = vmax.f32 %v85, 0.0
  %v158 = vmax.f32 %v86, 0.0
  %v159 = vmax.f32 %v87, 0.0
  %v160 = vmax.f32 %v88, 0.0
  %v161 = vmax.f32 %v89, 0.0
  %v162 = vmax.f32 %v90, 0.0
  %v163 = vmax.f32 %v91, 0.0
  %v164 = vmax.f32 %v92, 0.0
  %v165 = vmax.f32 %v93, 0.0
  %v166 = vmax.f32 %v94, 0.0
  %v167 = vmax.f32 %v95, 0.0
  %v168 = vpack.c.bf16 %v97, %v96
  %v169 = vpack.c.bf16 %v99, %v98
  %v170 = vpack.c.bf16 %v101, %v100
  %v171 = vpack.c.bf16 %v103, %v102
  %v172 = vpack.c.bf16 %v105, %v104
  %v173 = vpack.c.bf16 %v107, %v106
  %v174 = vpack.c.bf16 %v109, %v108
  %v175 = vpack.c.bf16 %v111, %v110
  %v176 = vpack.c.bf16 %v113, %v112
  %v177 = vpack.c.bf16 %v115, %v114
  %v178 = vpack.c.bf16 %v117, %v116
  %v179 = vpack.c.bf16 %v119, %v118
  %v180 = vpack.c.bf16 %v121, %v120
  %v181 = vpack.c.bf16 %v123, %v122
  %v182 = vpack.c.bf16 %v125, %v124
  %v183 = vpack.c.bf16 %v127, %v126
  %v184 = vpack.c.bf16 %v129, %v128
  %v185 = vpack.c.bf16 %v131, %v130
  %v186 = vpack.c.bf16 %v133, %v132
  %v187 = vpack.c.bf16 %v135, %v134
  %v188 = vpack.c.bf16 %v137, %v136
  %v189 = vpack.c.bf16 %v139, %v138
  %v190 = vpack.c.bf16 %v141, %v140
  %v191 = vpack.c.bf16 %v143, %v142
  %v192 = vpack.c.bf16 %v145, %v144
  %v193 = vpack.c.bf16 %v147, %v146
  %v194 = vpack.c.bf16 %v149, %v148
  %v195 = vpack.c.bf16 %v151, %v150
  %v196 = vpack.c.bf16 %v153, %v152
  %v197 = vpack.c.bf16 %v155, %v154
  %v198 = vpack.c.bf16 %v157, %v156
  %v199 = vpack.c.bf16 %v159, %v158
  %v200 = vpack.c.bf16 %v161, %v160
  %v201 = vpack.c.bf16 %v163, %v162
  %v202 = vpack.c.bf16 %v165, %v164
  %v203 = vpack.c.bf16 %v167, %v166
  %v204 = vld [vmem:[%s1] sm:$0xff]
  %v205 = vld [vmem:[%s1 + $0x8] sm:$0xff]
  %v206 = vld [vmem:[%s1 + $0x10] sm:$0xf]
  %v207 = vld [vmem:[%s1 + $0x14] sm:$0xff]
  %v208 = vld [vmem:[%s1 + $0x1c] sm:$0xff]
  %v209 = vld [vmem:[%s1 + $0x24] sm:$0xf]
  %v210 = vld [vmem:[%s1 + $0x28] sm:$0xff]
  %v211 = vld [vmem:[%s1 + $0x30] sm:$0xff]
  %v212 = vld [vmem:[%s1 + $0x38] sm:$0xf]
  %v213 = vld [vmem:[%s1 + $0x3c] sm:$0xff]
  %v214 = vld [vmem:[%s1 + $0x44] sm:$0xff]
  %v215 = vld [vmem:[%s1 + $0x4c] sm:$0xf]
  %v216 = vld [vmem:[%s1 + $0x50] sm:$0xff]
  %v217 = vld [vmem:[%s1 + $0x58] sm:$0xff]
  %v218 = vld [vmem:[%s1 + $0x60] sm:$0xf]
  %v219 = vld [vmem:[%s1 + $0x64] sm:$0xff]
  %v220 = vld [vmem:[%s1 + $0x6c] sm:$0xff]
  %v221 = vld [vmem:[%s1 + $0x74] sm:$0xf]
  %v222 = vld [vmem:[%s1 + $0x78] sm:$0xff]
  %v223 = vld [vmem:[%s1 + $0x80] sm:$0xff]
  %v224 = vld [vmem:[%s1 + $0x88] sm:$0xf]
  %v225 = vld [vmem:[%s1 + $0x8c] sm:$0xff]
  %v226 = vld [vmem:[%s1 + $0x94] sm:$0xff]
  %v227 = vld [vmem:[%s1 + $0x9c] sm:$0xf]
  %v228 = vld [vmem:[%s1 + $0xa0] sm:$0xff]
  %v229 = vld [vmem:[%s1 + $0xa8] sm:$0xff]
  %v230 = vld [vmem:[%s1 + $0xb0] sm:$0xf]
  %v231 = vld [vmem:[%s1 + $0xb4] sm:$0xff]
  %v232 = vld [vmem:[%s1 + $0xbc] sm:$0xff]
  %v233 = vld [vmem:[%s1 + $0xc4] sm:$0xf]
  %v234 = vld [vmem:[%s1 + $0xc8] sm:$0xff]
  %v235 = vld [vmem:[%s1 + $0xd0] sm:$0xff]
  %v236 = vld [vmem:[%s1 + $0xd8] sm:$0xf]
  %v237 = vld [vmem:[%s1 + $0xdc] sm:$0xff]
  %v238 = vld [vmem:[%s1 + $0xe4] sm:$0xff]
  %v239 = vld [vmem:[%s1 + $0xec] sm:$0xf]
  %v240 = vld [vmem:[%s1 + $0xf0] sm:$0xff]
  %v241 = vld [vmem:[%s1 + $0xf8] sm:$0xff]
  %v242 = vld [vmem:[%s1 + $0x100] sm:$0xf]
  %v243 = vld [vmem:[%s1 + $0x104] sm:$0xff]
  %v244 = vld [vmem:[%s1 + $0x10c] sm:$0xff]
  %v245 = vld [vmem:[%s1 + $0x114] sm:$0xf]
  %v246 = vld [vmem:[%s1 + $0x118] sm:$0xff]
  %v247 = vld [vmem:[%s1 + $0x120] sm:$0xff]
  %v248 = vld [vmem:[%s1 + $0x128] sm:$0xf]
  %v249 = vld [vmem:[%s1 + $0x12c] sm:$0xff]
  %v250 = vld [vmem:[%s1 + $0x134] sm:$0xff]
  %v251 = vld [vmem:[%s1 + $0x13c] sm:$0xf]
  %v300 = vunpack.c.l.b16 %v204
  %v301 = vunpack.c.h.b16 %v204
  %v302 = vunpack.c.l.b16 %v205
  %v303 = vunpack.c.h.b16 %v205
  %v304 = vunpack.c.l.b16 %v206
  %v305 = vunpack.c.l.b16 %v207
  %v306 = vunpack.c.h.b16 %v207
  %v307 = vunpack.c.l.b16 %v208
  %v308 = vunpack.c.h.b16 %v208
  %v309 = vunpack.c.l.b16 %v209
  %v310 = vunpack.c.l.b16 %v210
  %v311 = vunpack.c.h.b16 %v210
  %v312 = vunpack.c.l.b16 %v211
  %v313 = vunpack.c.h.b16 %v211
  %v314 = vunpack.c.l.b16 %v212
  %v315 = vunpack.c.l.b16 %v213
  %v316 = vunpack.c.h.b16 %v213
  %v317 = vunpack.c.l.b16 %v214
  %v318 = vunpack.c.h.b16 %v214
  %v319 = vunpack.c.l.b16 %v215
  %v320 = vunpack.c.l.b16 %v216
  %v321 = vunpack.c.h.b16 %v216
  %v322 = vunpack.c.l.b16 %v217
  %v323 = vunpack.c.h.b16 %v217
  %v324 = vunpack.c.l.b16 %v218
  %v325 = vunpack.c.l.b16 %v219
  %v326 = vunpack.c.h.b16 %v219
  %v327 = vunpack.c.l.b16 %v220
  %v328 = vunpack.c.h.b16 %v220
  %v329 = vunpack.c.l.b16 %v221
  %v330 = vunpack.c.l.b16 %v222
  %v331 = vunpack.c.h.b16 %v222
  %v332 = vunpack.c.l.b16 %v223
  %v333 = vunpack.c.h.b16 %v223
  %v334 = vunpack.c.l.b16 %v224
  %v335 = vunpack.c.l.b16 %v225
  %v336 = vunpack.c.h.b16 %v225
  %v337 = vunpack.c.l.b16 %v226
  %v338 = vunpack.c.h.b16 %v226
  %v339 = vunpack.c.l.b16 %v227
  %v340 = vunpack.c.l.b16 %v228
  %v341 = vunpack.c.h.b16 %v228
  %v342 = vunpack.c.l.b16 %v229
  %v343 = vunpack.c.h.b16 %v229
  %v344 = vunpack.c.l.b16 %v230
  %v345 = vunpack.c.l.b16 %v231
  %v346 = vunpack.c.h.b16 %v231
  %v347 = vunpack.c.l.b16 %v232
  %v348 = vunpack.c.h.b16 %v232
  %v349 = vunpack.c.l.b16 %v233
  %v350 = vunpack.c.l.b16 %v234
  %v351 = vunpack.c.h.b16 %v234
  %v352 = vunpack.c.l.b16 %v235
  %v353 = vunpack.c.h.b16 %v235
  %v354 = vunpack.c.l.b16 %v236
  %v355 = vunpack.c.l.b16 %v237
  %v356 = vunpack.c.h.b16 %v237
  %v357 = vunpack.c.l.b16 %v238
  %v358 = vunpack.c.h.b16 %v238
  %v359 = vunpack.c.l.b16 %v239
  %v360 = vunpack.c.l.b16 %v240
  %v361 = vunpack.c.h.b16 %v240
  %v362 = vunpack.c.l.b16 %v241
  %v363 = vunpack.c.h.b16 %v241
  %v364 = vunpack.c.l.b16 %v242
  %v365 = vunpack.c.l.b16 %v243
  %v366 = vunpack.c.h.b16 %v243
  %v367 = vunpack.c.l.b16 %v244
  %v368 = vunpack.c.h.b16 %v244
  %v369 = vunpack.c.l.b16 %v245
  %v370 = vunpack.c.l.b16 %v246
  %v371 = vunpack.c.h.b16 %v246
  %v372 = vunpack.c.l.b16 %v247
  %v373 = vunpack.c.h.b16 %v247
  %v374 = vunpack.c.l.b16 %v248
  %v375 = vunpack.c.l.b16 %v249
  %v376 = vunpack.c.h.b16 %v249
  %v377 = vunpack.c.l.b16 %v250
  %v378 = vunpack.c.h.b16 %v250
  %v379 = vunpack.c.l.b16 %v251
  %v380 = vpack.c.b16 %v305, %v300
  %v381 = vpack.c.b16 %v306, %v301
  %v382 = vpack.c.b16 %v307, %v302
  %v383 = vpack.c.b16 %v308, %v303
  %v384 = vpack.c.b16 %v309, %v304
  %v385 = vpack.c.b16 %v315, %v310
  %v386 = vpack.c.b16 %v316, %v311
  %v387 = vpack.c.b16 %v317, %v312
  %v388 = vpack.c.b16 %v318, %v313
  %v389 = vpack.c.b16 %v319, %v314
  %v390 = vpack.c.b16 %v325, %v320
  %v391 = vpack.c.b16 %v326, %v321
  %v392 = vpack.c.b16 %v327, %v322
  %v393 = vpack.c.b16 %v328, %v323
  %v394 = vpack.c.b16 %v329, %v324
  %v395 = vpack.c.b16 %v335, %v330
  %v396 = vpack.c.b16 %v336, %v331
  %v397 = vpack.c.b16 %v337, %v332
  %v398 = vpack.c.b16 %v338, %v333
  %v399 = vpack.c.b16 %v339, %v334
  %v400 = vpack.c.b16 %v345, %v340
  %v401 = vpack.c.b16 %v346, %v341
  %v402 = vpack.c.b16 %v347, %v342
  %v403 = vpack.c.b16 %v348, %v343
  %v404 = vpack.c.b16 %v349, %v344
  %v405 = vpack.c.b16 %v355, %v350
  %v406 = vpack.c.b16 %v356, %v351
  %v407 = vpack.c.b16 %v357, %v352
  %v408 = vpack.c.b16 %v358, %v353
  %v409 = vpack.c.b16 %v359, %v354
  %v410 = vpack.c.b16 %v365, %v360
  %v411 = vpack.c.b16 %v366, %v361
  %v412 = vpack.c.b16 %v367, %v362
  %v413 = vpack.c.b16 %v368, %v363
  %v414 = vpack.c.b16 %v369, %v364
  %v415 = vpack.c.b16 %v375, %v370
  %v416 = vpack.c.b16 %v376, %v371
  %v417 = vpack.c.b16 %v377, %v372
  %v418 = vpack.c.b16 %v378, %v373
  %v419 = vpack.c.b16 %v379, %v374
  %vm452 = vcmask 523264
  %v454 = vsel %vm452, %v384, 0
  %v457 = vsel %vm452, %v389, 0
  %v460 = vsel %vm452, %v394, 0
  %v463 = vsel %vm452, %v399, 0
  %v466 = vsel %vm452, %v404, 0
  %v469 = vsel %vm452, %v409, 0
  %v472 = vsel %vm452, %v414, 0
  %v475 = vsel %vm452, %v419, 0
  %477 = vmatprep.subr.bf16.mxu0 0
  %478 = vmatpush1.bf16.msra.mxu0 %v175
  %479 = vmatprep.subr.bf16.mxu0 0
  %480 = vmatpush1.bf16.msra.mxu0 %v174
  %481 = vmatprep.subr.bf16.mxu0 0
  %482 = vmatpush1.bf16.msra.mxu0 %v173
  %483 = vmatprep.subr.bf16.mxu0 0
  %484 = vmatpush1.bf16.msra.mxu0 %v172
  %485 = vmatprep.subr.bf16.mxu0 0
  %486 = vmatpush1.bf16.msra.mxu0 %v171
  %487 = vmatprep.subr.bf16.mxu0 0
  %488 = vmatpush1.bf16.msra.mxu0 %v170
  %489 = vmatprep.subr.bf16.mxu0 0
  %490 = vmatpush1.bf16.msra.mxu0 %v169
  %491 = vmatprep.subr.bf16.mxu0 0
  %492 = vmatpush1.bf16.msra.mxu0 %v168
  %493 = vmatprep.subr.bf16.mxu0 0
  %494 = vmatpush2.bf16.msra.mxu0 %v183
  %495 = vmatprep.subr.bf16.mxu0 0
  %496 = vmatpush2.bf16.msra.mxu0 %v182
  %497 = vmatprep.subr.bf16.mxu0 0
  %498 = vmatpush2.bf16.msra.mxu0 %v181
  %499 = vmatprep.subr.bf16.mxu0 0
  %500 = vmatpush2.bf16.msra.mxu0 %v180
  %501 = vmatprep.subr.bf16.mxu0 0
  %502 = vmatpush2.bf16.msra.mxu0 %v179
  %503 = vmatprep.subr.bf16.mxu0 0
  %504 = vmatpush2.bf16.msra.mxu0 %v178
  %505 = vmatprep.subr.bf16.mxu0 0
  %506 = vmatpush2.bf16.msra.mxu0 %v177
  %507 = vmatprep.subr.bf16.mxu0 0
  %508 = vmatpush2.bf16.msra.mxu0 %v176
  %509 = vmatprep.mubr.bf16.mxu0 %v381
  %510 = vmatmul.mubr.bf16.gmra.mxu0 %v380
  %v511 = vpop.f32.mrf.mxu0
  %v512 = vadd.f32 0.0, %v511
  %v513 = vpop.f32.mrf.mxu0
  %v514 = vpop.f32.mrf.mxu0
  %v515 = vadd.f32 0.0, %v514
  %v516 = vpop.f32.mrf.mxu0
  %517 = vmatprep.mubr.bf16.mxu0 %v386
  %518 = vmatmul.mubr.bf16.gmra.mxu0 %v385
  %v519 = vpop.f32.mrf.mxu0
  %v520 = vadd.f32 0.0, %v519
  %v521 = vpop.f32.mrf.mxu0
  %v522 = vpop.f32.mrf.mxu0
  %v523 = vadd.f32 0.0, %v522
  %v524 = vpop.f32.mrf.mxu0
  %525 = vmatprep.mubr.bf16.mxu0 %v391
  %526 = vmatmul.mubr.bf16.gmra.mxu0 %v390
  %v527 = vpop.f32.mrf.mxu0
  %v528 = vadd.f32 0.0, %v527
  %v529 = vpop.f32.mrf.mxu0
  %v530 = vpop.f32.mrf.mxu0
  %v531 = vadd.f32 0.0, %v530
  %v532 = vpop.f32.mrf.mxu0
  %533 = vmatprep.mubr.bf16.mxu0 %v396
  %534 = vmatmul.mubr.bf16.gmra.mxu0 %v395
  %v535 = vpop.f32.mrf.mxu0
  %v536 = vadd.f32 0.0, %v535
  %v537 = vpop.f32.mrf.mxu0
  %v538 = vpop.f32.mrf.mxu0
  %v539 = vadd.f32 0.0, %v538
  %v540 = vpop.f32.mrf.mxu0
  %541 = vmatprep.mubr.bf16.mxu0 %v401
  %542 = vmatmul.mubr.bf16.gmra.mxu0 %v400
  %v543 = vpop.f32.mrf.mxu0
  %v544 = vadd.f32 0.0, %v543
  %v545 = vpop.f32.mrf.mxu0
  %v546 = vpop.f32.mrf.mxu0
  %v547 = vadd.f32 0.0, %v546
  %v548 = vpop.f32.mrf.mxu0
  %549 = vmatprep.mubr.bf16.mxu0 %v406
  %550 = vmatmul.mubr.bf16.gmra.mxu0 %v405
  %v551 = vpop.f32.mrf.mxu0
  %v552 = vadd.f32 0.0, %v551
  %v553 = vpop.f32.mrf.mxu0
  %v554 = vpop.f32.mrf.mxu0
  %v555 = vadd.f32 0.0, %v554
  %v556 = vpop.f32.mrf.mxu0
  %557 = vmatprep.mubr.bf16.mxu0 %v411
  %558 = vmatmul.mubr.bf16.gmra.mxu0 %v410
  %v559 = vpop.f32.mrf.mxu0
  %v560 = vadd.f32 0.0, %v559
  %v561 = vpop.f32.mrf.mxu0
  %v562 = vpop.f32.mrf.mxu0
  %v563 = vadd.f32 0.0, %v562
  %v564 = vpop.f32.mrf.mxu0
  %565 = vmatprep.mubr.bf16.mxu0 %v416
  %566 = vmatmul.mubr.bf16.gmra.mxu0 %v415
  %v567 = vpop.f32.mrf.mxu0
  %v568 = vadd.f32 0.0, %v567
  %v569 = vpop.f32.mrf.mxu0
  %v570 = vpop.f32.mrf.mxu0
  %v571 = vadd.f32 0.0, %v570
  %v572 = vpop.f32.mrf.mxu0
  %573 = vdwg.mxu0
  %574 = vmatprep.subr.bf16.mxu0 0
  %575 = vmatpush1.bf16.msra.mxu0 %v191
  %576 = vmatprep.subr.bf16.mxu0 0
  %577 = vmatpush1.bf16.msra.mxu0 %v190
  %578 = vmatprep.subr.bf16.mxu0 0
  %579 = vmatpush1.bf16.msra.mxu0 %v189
  %580 = vmatprep.subr.bf16.mxu0 0
  %581 = vmatpush1.bf16.msra.mxu0 %v188
  %582 = vmatprep.subr.bf16.mxu0 0
  %583 = vmatpush1.bf16.msra.mxu0 %v187
  %584 = vmatprep.subr.bf16.mxu0 0
  %585 = vmatpush1.bf16.msra.mxu0 %v186
  %586 = vmatprep.subr.bf16.mxu0 0
  %587 = vmatpush1.bf16.msra.mxu0 %v185
  %588 = vmatprep.subr.bf16.mxu0 0
  %589 = vmatpush1.bf16.msra.mxu0 %v184
  %590 = vmatprep.subr.bf16.mxu0 0
  %591 = vmatpush2.bf16.msra.mxu0 %v199
  %592 = vmatprep.subr.bf16.mxu0 0
  %593 = vmatpush2.bf16.msra.mxu0 %v198
  %594 = vmatprep.subr.bf16.mxu0 0
  %595 = vmatpush2.bf16.msra.mxu0 %v197
  %596 = vmatprep.subr.bf16.mxu0 0
  %597 = vmatpush2.bf16.msra.mxu0 %v196
  %598 = vmatprep.subr.bf16.mxu0 0
  %599 = vmatpush2.bf16.msra.mxu0 %v195
  %600 = vmatprep.subr.bf16.mxu0 0
  %601 = vmatpush2.bf16.msra.mxu0 %v194
  %602 = vmatprep.subr.bf16.mxu0 0
  %603 = vmatpush2.bf16.msra.mxu0 %v193
  %604 = vmatprep.subr.bf16.mxu0 0
  %605 = vmatpush2.bf16.msra.mxu0 %v192
  %606 = vmatprep.mubr.bf16.mxu0 %v383
  %607 = vmatmul.mubr.bf16.gmra.mxu0 %v382
  %v608 = vpop.f32.mrf.mxu0
  %v609 = vadd.f32 %v512, %v608
  %v610 = vpop.f32.mrf.mxu0
  %v611 = vpop.f32.mrf.mxu0
  %v612 = vadd.f32 %v515, %v611
  %v613 = vpop.f32.mrf.mxu0
  %614 = vmatprep.mubr.bf16.mxu0 %v388
  %615 = vmatmul.mubr.bf16.gmra.mxu0 %v387
  %v616 = vpop.f32.mrf.mxu0
  %v617 = vadd.f32 %v520, %v616
  %v618 = vpop.f32.mrf.mxu0
  %v619 = vpop.f32.mrf.mxu0
  %v620 = vadd.f32 %v523, %v619
  %v621 = vpop.f32.mrf.mxu0
  %622 = vmatprep.mubr.bf16.mxu0 %v393
  %623 = vmatmul.mubr.bf16.gmra.mxu0 %v392
  %v624 = vpop.f32.mrf.mxu0
  %v625 = vadd.f32 %v528, %v624
  %v626 = vpop.f32.mrf.mxu0
  %v627 = vpop.f32.mrf.mxu0
  %v628 = vadd.f32 %v531, %v627
  %v629 = vpop.f32.mrf.mxu0
  %630 = vmatprep.mubr.bf16.mxu0 %v398
  %631 = vmatmul.mubr.bf16.gmra.mxu0 %v397
  %v632 = vpop.f32.mrf.mxu0
  %v633 = vadd.f32 %v536, %v632
  %v634 = vpop.f32.mrf.mxu0
  %v635 = vpop.f32.mrf.mxu0
  %v636 = vadd.f32 %v539, %v635
  %v637 = vpop.f32.mrf.mxu0
  %638 = vmatprep.mubr.bf16.mxu0 %v403
  %639 = vmatmul.mubr.bf16.gmra.mxu0 %v402
  %v640 = vpop.f32.mrf.mxu0
  %v641 = vadd.f32 %v544, %v640
  %v642 = vpop.f32.mrf.mxu0
  %v643 = vpop.f32.mrf.mxu0
  %v644 = vadd.f32 %v547, %v643
  %v645 = vpop.f32.mrf.mxu0
  %646 = vmatprep.mubr.bf16.mxu0 %v408
  %647 = vmatmul.mubr.bf16.gmra.mxu0 %v407
  %v648 = vpop.f32.mrf.mxu0
  %v649 = vadd.f32 %v552, %v648
  %v650 = vpop.f32.mrf.mxu0
  %v651 = vpop.f32.mrf.mxu0
  %v652 = vadd.f32 %v555, %v651
  %v653 = vpop.f32.mrf.mxu0
  %654 = vmatprep.mubr.bf16.mxu0 %v413
  %655 = vmatmul.mubr.bf16.gmra.mxu0 %v412
  %v656 = vpop.f32.mrf.mxu0
  %v657 = vadd.f32 %v560, %v656
  %v658 = vpop.f32.mrf.mxu0
  %v659 = vpop.f32.mrf.mxu0
  %v660 = vadd.f32 %v563, %v659
  %v661 = vpop.f32.mrf.mxu0
  %662 = vmatprep.mubr.bf16.mxu0 %v418
  %663 = vmatmul.mubr.bf16.gmra.mxu0 %v417
  %v664 = vpop.f32.mrf.mxu0
  %v665 = vadd.f32 %v568, %v664
  %v666 = vpop.f32.mrf.mxu0
  %v667 = vpop.f32.mrf.mxu0
  %v668 = vadd.f32 %v571, %v667
  %v669 = vpop.f32.mrf.mxu0
  %670 = vdwg.mxu0
  %671 = vmatprep.subr.bf16.mxu0 0
  %672 = vmatpush1.bf16.msra.mxu0 0
  %673 = vmatprep.subr.bf16.mxu0 0
  %674 = vmatpush1.bf16.msra.mxu0 0
  %675 = vmatprep.subr.bf16.mxu0 0
  %676 = vmatpush1.bf16.msra.mxu0 0
  %677 = vmatprep.subr.bf16.mxu0 0
  %678 = vmatpush1.bf16.msra.mxu0 0
  %679 = vmatprep.subr.bf16.mxu0 0
  %680 = vmatpush1.bf16.msra.mxu0 %v203
  %681 = vmatprep.subr.bf16.mxu0 0
  %682 = vmatpush1.bf16.msra.mxu0 %v202
  %683 = vmatprep.subr.bf16.mxu0 0
  %684 = vmatpush1.bf16.msra.mxu0 %v201
  %685 = vmatprep.subr.bf16.mxu0 0
  %686 = vmatpush1.bf16.msra.mxu0 %v200
  %687 = vmatprep.subr.bf16.mxu0 0
  %688 = vmatpush2.bf16.msra.mxu0 0
  %689 = vmatprep.subr.bf16.mxu0 0
  %690 = vmatpush2.bf16.msra.mxu0 0
  %691 = vmatprep.subr.bf16.mxu0 0
  %692 = vmatpush2.bf16.msra.mxu0 0
  %693 = vmatprep.subr.bf16.mxu0 0
  %694 = vmatpush2.bf16.msra.mxu0 0
  %695 = vmatprep.subr.bf16.mxu0 0
  %696 = vmatpush2.bf16.msra.mxu0 0
  %697 = vmatprep.subr.bf16.mxu0 0
  %698 = vmatpush2.bf16.msra.mxu0 0
  %699 = vmatprep.subr.bf16.mxu0 0
  %700 = vmatpush2.bf16.msra.mxu0 0
  %701 = vmatprep.subr.bf16.mxu0 0
  %702 = vmatpush2.bf16.msra.mxu0 0
  %703 = vmatprep.mubr.bf16.mxu0 0
  %704 = vmatmul.mubr.bf16.gmra.mxu0 %v454
  %v705 = vpop.f32.mrf.mxu0
  %v706 = vadd.f32 %v609, %v705
  %v707 = vpop.f32.mrf.mxu0
  %v708 = vpop.f32.mrf.mxu0
  %v709 = vadd.f32 %v612, %v708
  %v710 = vpop.f32.mrf.mxu0
  %711 = vmatprep.mubr.bf16.mxu0 0
  %712 = vmatmul.mubr.bf16.gmra.mxu0 %v457
  %v713 = vpop.f32.mrf.mxu0
  %v714 = vadd.f32 %v617, %v713
  %v715 = vpop.f32.mrf.mxu0
  %v716 = vpop.f32.mrf.mxu0
  %v717 = vadd.f32 %v620, %v716
  %v718 = vpop.f32.mrf.mxu0
  %719 = vmatprep.mubr.bf16.mxu0 0
  %720 = vmatmul.mubr.bf16.gmra.mxu0 %v460
  %v721 = vpop.f32.mrf.mxu0
  %v722 = vadd.f32 %v625, %v721
  %v723 = vpop.f32.mrf.mxu0
  %v724 = vpop.f32.mrf.mxu0
  %v725 = vadd.f32 %v628, %v724
  %v726 = vpop.f32.mrf.mxu0
  %727 = vmatprep.mubr.bf16.mxu0 0
  %728 = vmatmul.mubr.bf16.gmra.mxu0 %v463
  %v729 = vpop.f32.mrf.mxu0
  %v730 = vadd.f32 %v633, %v729
  %v731 = vpop.f32.mrf.mxu0
  %v732 = vpop.f32.mrf.mxu0
  %v733 = vadd.f32 %v636, %v732
  %v734 = vpop.f32.mrf.mxu0
  %735 = vmatprep.mubr.bf16.mxu0 0
  %736 = vmatmul.mubr.bf16.gmra.mxu0 %v466
  %v737 = vpop.f32.mrf.mxu0
  %v738 = vadd.f32 %v641, %v737
  %v739 = vpop.f32.mrf.mxu0
  %v740 = vpop.f32.mrf.mxu0
  %v741 = vadd.f32 %v644, %v740
  %v742 = vpop.f32.mrf.mxu0
  %743 = vmatprep.mubr.bf16.mxu0 0
  %744 = vmatmul.mubr.bf16.gmra.mxu0 %v469
  %v745 = vpop.f32.mrf.mxu0
  %v746 = vadd.f32 %v649, %v745
  %v747 = vpop.f32.mrf.mxu0
  %v748 = vpop.f32.mrf.mxu0
  %v749 = vadd.f32 %v652, %v748
  %v750 = vpop.f32.mrf.mxu0
  %751 = vmatprep.mubr.bf16.mxu0 0
  %752 = vmatmul.mubr.bf16.gmra.mxu0 %v472
  %v753 = vpop.f32.mrf.mxu0
  %v754 = vadd.f32 %v657, %v753
  %v755 = vpop.f32.mrf.mxu0
  %v756 = vpop.f32.mrf.mxu0
  %v757 = vadd.f32 %v660, %v756
  %v758 = vpop.f32.mrf.mxu0
  %759 = vmatprep.mubr.bf16.mxu0 0
  %760 = vmatmul.mubr.bf16.gmra.mxu0 %v475
  %v761 = vpop.f32.mrf.mxu0
  %v762 = vadd.f32 %v665, %v761
  %v763 = vpop.f32.mrf.mxu0
  %v764 = vpop.f32.mrf.mxu0
  %v765 = vadd.f32 %v668, %v764
  %v766 = vpop.f32.mrf.mxu0
  %767 = vdwg.mxu0
  %v768 = vmul.f32 %v706, %v706
  %v769 = vmul.f32 %v709, %v709
  %v770 = vmul.f32 %v714, %v714
  %v771 = vmul.f32 %v717, %v717
  %v772 = vmul.f32 %v722, %v722
  %v773 = vmul.f32 %v725, %v725
  %v774 = vmul.f32 %v730, %v730
  %v775 = vmul.f32 %v733, %v733
  %v776 = vmul.f32 %v738, %v738
  %v777 = vmul.f32 %v741, %v741
  %v778 = vmul.f32 %v746, %v746
  %v779 = vmul.f32 %v749, %v749
  %v780 = vmul.f32 %v754, %v754
  %v781 = vmul.f32 %v757, %v757
  %v782 = vmul.f32 %v762, %v762
  %v783 = vmul.f32 %v765, %v765
  %vm784 = vcmask 400384
  %v785 = vsel %vm784, %v706, 0.0
  %786 = vadd.xlane.f32.xlu0 %v785
  %v787 = vpop.xlane.xlu0 %786
  %v788 = vsel %vm784, %v709, 0.0
  %789 = vadd.xlane.f32.xlu0 %v788
  %v790 = vpop.xlane.xlu0 %789
  %v791 = vsel %vm784, %v714, 0.0
  %792 = vadd.xlane.f32.xlu0 %v791
  %v793 = vpop.xlane.xlu0 %792
  %v794 = vsel %vm784, %v717, 0.0
  %795 = vadd.xlane.f32.xlu0 %v794
  %v796 = vpop.xlane.xlu0 %795
  %v797 = vsel %vm784, %v722, 0.0
  %798 = vadd.xlane.f32.xlu0 %v797
  %v799 = vpop.xlane.xlu0 %798
  %v800 = vsel %vm784, %v725, 0.0
  %801 = vadd.xlane.f32.xlu0 %v800
  %v802 = vpop.xlane.xlu0 %801
  %v803 = vsel %vm784, %v730, 0.0
  %804 = vadd.xlane.f32.xlu0 %v803
  %v805 = vpop.xlane.xlu0 %804
  %v806 = vsel %vm784, %v733, 0.0
  %807 = vadd.xlane.f32.xlu0 %v806
  %v808 = vpop.xlane.xlu0 %807
  %v809 = vsel %vm784, %v738, 0.0
  %810 = vadd.xlane.f32.xlu0 %v809
  %v811 = vpop.xlane.xlu0 %810
  %v812 = vsel %vm784, %v741, 0.0
  %813 = vadd.xlane.f32.xlu0 %v812
  %v814 = vpop.xlane.xlu0 %813
  %v815 = vsel %vm784, %v746, 0.0
  %816 = vadd.xlane.f32.xlu0 %v815
  %v817 = vpop.xlane.xlu0 %816
  %v818 = vsel %vm784, %v749, 0.0
  %819 = vadd.xlane.f32.xlu0 %v818
  %v820 = vpop.xlane.xlu0 %819
  %v821 = vsel %vm784, %v754, 0.0
  %822 = vadd.xlane.f32.xlu0 %v821
  %v823 = vpop.xlane.xlu0 %822
  %v824 = vsel %vm784, %v757, 0.0
  %825 = vadd.xlane.f32.xlu0 %v824
  %v826 = vpop.xlane.xlu0 %825
  %v827 = vsel %vm784, %v762, 0.0
  %828 = vadd.xlane.f32.xlu0 %v827
  %v829 = vpop.xlane.xlu0 %828
  %v830 = vsel %vm784, %v765, 0.0
  %831 = vadd.xlane.f32.xlu0 %v830
  %v832 = vpop.xlane.xlu0 %831
  %v833 = vsel %vm784, %v768, 0.0
  %834 = vadd.xlane.f32.xlu0 %v833
  %v835 = vpop.xlane.xlu0 %834
  %v836 = vsel %vm784, %v769, 0.0
  %837 = vadd.xlane.f32.xlu0 %v836
  %v838 = vpop.xlane.xlu0 %837
  %v839 = vsel %vm784, %v770, 0.0
  %840 = vadd.xlane.f32.xlu0 %v839
  %v841 = vpop.xlane.xlu0 %840
  %v842 = vsel %vm784, %v771, 0.0
  %843 = vadd.xlane.f32.xlu0 %v842
  %v844 = vpop.xlane.xlu0 %843
  %v845 = vsel %vm784, %v772, 0.0
  %846 = vadd.xlane.f32.xlu0 %v845
  %v847 = vpop.xlane.xlu0 %846
  %v848 = vsel %vm784, %v773, 0.0
  %849 = vadd.xlane.f32.xlu0 %v848
  %v850 = vpop.xlane.xlu0 %849
  %v851 = vsel %vm784, %v774, 0.0
  %852 = vadd.xlane.f32.xlu0 %v851
  %v853 = vpop.xlane.xlu0 %852
  %v854 = vsel %vm784, %v775, 0.0
  %855 = vadd.xlane.f32.xlu0 %v854
  %v856 = vpop.xlane.xlu0 %855
  %v857 = vsel %vm784, %v776, 0.0
  %858 = vadd.xlane.f32.xlu0 %v857
  %v859 = vpop.xlane.xlu0 %858
  %v860 = vsel %vm784, %v777, 0.0
  %861 = vadd.xlane.f32.xlu0 %v860
  %v862 = vpop.xlane.xlu0 %861
  %v863 = vsel %vm784, %v778, 0.0
  %864 = vadd.xlane.f32.xlu0 %v863
  %v865 = vpop.xlane.xlu0 %864
  %v866 = vsel %vm784, %v779, 0.0
  %867 = vadd.xlane.f32.xlu0 %v866
  %v868 = vpop.xlane.xlu0 %867
  %v869 = vsel %vm784, %v780, 0.0
  %870 = vadd.xlane.f32.xlu0 %v869
  %v871 = vpop.xlane.xlu0 %870
  %v872 = vsel %vm784, %v781, 0.0
  %873 = vadd.xlane.f32.xlu0 %v872
  %v874 = vpop.xlane.xlu0 %873
  %v875 = vsel %vm784, %v782, 0.0
  %876 = vadd.xlane.f32.xlu0 %v875
  %v877 = vpop.xlane.xlu0 %876
  %v878 = vsel %vm784, %v783, 0.0
  %879 = vadd.xlane.f32.xlu0 %v878
  %v880 = vpop.xlane.xlu0 %879
  %v881 = vmul.f32 %v787, 0.020408163
  %v882 = vmul.f32 %v790, 0.020408163
  %v883 = vmul.f32 %v793, 0.020408163
  %v884 = vmul.f32 %v796, 0.020408163
  %v885 = vmul.f32 %v799, 0.020408163
  %v886 = vmul.f32 %v802, 0.020408163
  %v887 = vmul.f32 %v805, 0.020408163
  %v888 = vmul.f32 %v808, 0.020408163
  %v889 = vmul.f32 %v811, 0.020408163
  %v890 = vmul.f32 %v814, 0.020408163
  %v891 = vmul.f32 %v817, 0.020408163
  %v892 = vmul.f32 %v820, 0.020408163
  %v893 = vmul.f32 %v823, 0.020408163
  %v894 = vmul.f32 %v826, 0.020408163
  %v895 = vmul.f32 %v829, 0.020408163
  %v896 = vmul.f32 %v832, 0.020408163
  %v897 = vmul.f32 %v835, 0.020408163
  %v898 = vmul.f32 %v838, 0.020408163
  %v899 = vmul.f32 %v841, 0.020408163
  %v900 = vmul.f32 %v844, 0.020408163
  %v901 = vmul.f32 %v847, 0.020408163
  %v902 = vmul.f32 %v850, 0.020408163
  %v903 = vmul.f32 %v853, 0.020408163
  %v904 = vmul.f32 %v856, 0.020408163
  %v905 = vmul.f32 %v859, 0.020408163
  %v906 = vmul.f32 %v862, 0.020408163
  %v907 = vmul.f32 %v865, 0.020408163
  %v908 = vmul.f32 %v868, 0.020408163
  %v909 = vmul.f32 %v871, 0.020408163
  %v910 = vmul.f32 %v874, 0.020408163
  %v911 = vmul.f32 %v877, 0.020408163
  %v912 = vmul.f32 %v880, 0.020408163
  %v913 = vmul.f32 %v881, %v881
  %v914 = vmul.f32 %v882, %v882
  %v915 = vmul.f32 %v883, %v883
  %v916 = vmul.f32 %v884, %v884
  %v917 = vmul.f32 %v885, %v885
  %v918 = vmul.f32 %v886, %v886
  %v919 = vmul.f32 %v887, %v887
  %v920 = vmul.f32 %v888, %v888
  %v921 = vmul.f32 %v889, %v889
  %v922 = vmul.f32 %v890, %v890
  %v923 = vmul.f32 %v891, %v891
  %v924 = vmul.f32 %v892, %v892
  %v925 = vmul.f32 %v893, %v893
  %v926 = vmul.f32 %v894, %v894
  %v927 = vmul.f32 %v895, %v895
  %v928 = vmul.f32 %v896, %v896
  %v929 = vsub.f32 %v897, %v913
  %v930 = vsub.f32 %v898, %v914
  %v931 = vsub.f32 %v899, %v915
  %v932 = vsub.f32 %v900, %v916
  %v933 = vsub.f32 %v901, %v917
  %v934 = vsub.f32 %v902, %v918
  %v935 = vsub.f32 %v903, %v919
  %v936 = vsub.f32 %v904, %v920
  %v937 = vsub.f32 %v905, %v921
  %v938 = vsub.f32 %v906, %v922
  %v939 = vsub.f32 %v907, %v923
  %v940 = vsub.f32 %v908, %v924
  %v941 = vsub.f32 %v909, %v925
  %v942 = vsub.f32 %v910, %v926
  %v943 = vsub.f32 %v911, %v927
  %v944 = vsub.f32 %v912, %v928
  %v945 = vld [vmem:[%s2] sm:$0xff]
  %v946 = vld [vmem:[%s2 + $0x8] sm:$0xff]
  %v947 = vld [vmem:[%s2 + $0x10] sm:$0xff]
  %v948 = vld [vmem:[%s2 + $0x18] sm:$0xff]
  %v949 = vld [vmem:[%s2 + $0x20] sm:$0xff]
  %v950 = vld [vmem:[%s2 + $0x28] sm:$0xff]
  %v951 = vld [vmem:[%s2 + $0x30] sm:$0xff]
  %v952 = vld [vmem:[%s2 + $0x38] sm:$0xff]
  %v953 = vld [vmem:[%s2 + $0x40] sm:$0xff]
  %v954 = vld [vmem:[%s2 + $0x48] sm:$0xff]
  %v955 = vld [vmem:[%s2 + $0x50] sm:$0xff]
  %v956 = vld [vmem:[%s2 + $0x58] sm:$0xff]
  %v957 = vld [vmem:[%s2 + $0x60] sm:$0xff]
  %v958 = vld [vmem:[%s2 + $0x68] sm:$0xff]
  %v959 = vld [vmem:[%s2 + $0x70] sm:$0xff]
  %v960 = vld [vmem:[%s2 + $0x78] sm:$0xff]
  %v961 = vadd.f32 %v929, 1e-05
  %v962 = vadd.f32 %v930, 1e-05
  %v963 = vadd.f32 %v931, 1e-05
  %v964 = vadd.f32 %v932, 1e-05
  %v965 = vadd.f32 %v933, 1e-05
  %v966 = vadd.f32 %v934, 1e-05
  %v967 = vadd.f32 %v935, 1e-05
  %v968 = vadd.f32 %v936, 1e-05
  %v969 = vadd.f32 %v937, 1e-05
  %v970 = vadd.f32 %v938, 1e-05
  %v971 = vadd.f32 %v939, 1e-05
  %v972 = vadd.f32 %v940, 1e-05
  %v973 = vadd.f32 %v941, 1e-05
  %v974 = vadd.f32 %v942, 1e-05
  %v975 = vadd.f32 %v943, 1e-05
  %v976 = vadd.f32 %v944, 1e-05
  %v977 = vrsqrt.pop %v961
  %v978 = vrsqrt.pop %v962
  %v979 = vrsqrt.pop %v963
  %v980 = vrsqrt.pop %v964
  %v981 = vrsqrt.pop %v965
  %v982 = vrsqrt.pop %v966
  %v983 = vrsqrt.pop %v967
  %v984 = vrsqrt.pop %v968
  %v985 = vrsqrt.pop %v969
  %v986 = vrsqrt.pop %v970
  %v987 = vrsqrt.pop %v971
  %v988 = vrsqrt.pop %v972
  %v989 = vrsqrt.pop %v973
  %v990 = vrsqrt.pop %v974
  %v991 = vrsqrt.pop %v975
  %v992 = vrsqrt.pop %v976
  %v993 = vmul.f32 %v945, %v977
  %v994 = vmul.f32 %v946, %v978
  %v995 = vmul.f32 %v947, %v979
  %v996 = vmul.f32 %v948, %v980
  %v997 = vmul.f32 %v949, %v981
  %v998 = vmul.f32 %v950, %v982
  %v999 = vmul.f32 %v951, %v983
  %v1000 = vmul.f32 %v952, %v984
  %v1001 = vmul.f32 %v953, %v985
  %v1002 = vmul.f32 %v954, %v986
  %v1003 = vmul.f32 %v955, %v987
  %v1004 = vmul.f32 %v956, %v988
  %v1005 = vmul.f32 %v957, %v989
  %v1006 = vmul.f32 %v958, %v990
  %v1007 = vmul.f32 %v959, %v991
  %v1008 = vmul.f32 %v960, %v992
  %v1009 = vld [vmem:[%s3] sm:$0xff]
  %v1010 = vld [vmem:[%s3 + $0x8] sm:$0xff]
  %v1011 = vld [vmem:[%s3 + $0x10] sm:$0xff]
  %v1012 = vld [vmem:[%s3 + $0x18] sm:$0xff]
  %v1013 = vld [vmem:[%s3 + $0x20] sm:$0xff]
  %v1014 = vld [vmem:[%s3 + $0x28] sm:$0xff]
  %v1015 = vld [vmem:[%s3 + $0x30] sm:$0xff]
  %v1016 = vld [vmem:[%s3 + $0x38] sm:$0xff]
  %v1017 = vld [vmem:[%s3 + $0x40] sm:$0xff]
  %v1018 = vld [vmem:[%s3 + $0x48] sm:$0xff]
  %v1019 = vld [vmem:[%s3 + $0x50] sm:$0xff]
  %v1020 = vld [vmem:[%s3 + $0x58] sm:$0xff]
  %v1021 = vld [vmem:[%s3 + $0x60] sm:$0xff]
  %v1022 = vld [vmem:[%s3 + $0x68] sm:$0xff]
  %v1023 = vld [vmem:[%s3 + $0x70] sm:$0xff]
  %v1024 = vld [vmem:[%s3 + $0x78] sm:$0xff]
  %v1025 = vmul.f32 %v881, %v993
  %v1026 = vmul.f32 %v882, %v994
  %v1027 = vmul.f32 %v883, %v995
  %v1028 = vmul.f32 %v884, %v996
  %v1029 = vmul.f32 %v885, %v997
  %v1030 = vmul.f32 %v886, %v998
  %v1031 = vmul.f32 %v887, %v999
  %v1032 = vmul.f32 %v888, %v1000
  %v1033 = vmul.f32 %v889, %v1001
  %v1034 = vmul.f32 %v890, %v1002
  %v1035 = vmul.f32 %v891, %v1003
  %v1036 = vmul.f32 %v892, %v1004
  %v1037 = vmul.f32 %v893, %v1005
  %v1038 = vmul.f32 %v894, %v1006
  %v1039 = vmul.f32 %v895, %v1007
  %v1040 = vmul.f32 %v896, %v1008
  %v1041 = vsub.f32 %v1009, %v1025
  %v1042 = vsub.f32 %v1010, %v1026
  %v1043 = vsub.f32 %v1011, %v1027
  %v1044 = vsub.f32 %v1012, %v1028
  %v1045 = vsub.f32 %v1013, %v1029
  %v1046 = vsub.f32 %v1014, %v1030
  %v1047 = vsub.f32 %v1015, %v1031
  %v1048 = vsub.f32 %v1016, %v1032
  %v1049 = vsub.f32 %v1017, %v1033
  %v1050 = vsub.f32 %v1018, %v1034
  %v1051 = vsub.f32 %v1019, %v1035
  %v1052 = vsub.f32 %v1020, %v1036
  %v1053 = vsub.f32 %v1021, %v1037
  %v1054 = vsub.f32 %v1022, %v1038
  %v1055 = vsub.f32 %v1023, %v1039
  %v1056 = vsub.f32 %v1024, %v1040
  %1058 = vset.pattern.permute.xlu0 0
  %1059 = vperm.xlu0 %1058, %v993
  %v1060 = vpop.permute.xlu0 %1059
  %1063 = vset.pattern.permute.xlu0 0
  %1064 = vperm.xlu0 %1063, %v994
  %v1065 = vpop.permute.xlu0 %1064
  %1068 = vset.pattern.permute.xlu0 0
  %1069 = vperm.xlu0 %1068, %v995
  %v1070 = vpop.permute.xlu0 %1069
  %1073 = vset.pattern.permute.xlu0 0
  %1074 = vperm.xlu0 %1073, %v996
  %v1075 = vpop.permute.xlu0 %1074
  %1078 = vset.pattern.permute.xlu0 0
  %1079 = vperm.xlu0 %1078, %v997
  %v1080 = vpop.permute.xlu0 %1079
  %1083 = vset.pattern.permute.xlu0 0
  %1084 = vperm.xlu0 %1083, %v998
  %v1085 = vpop.permute.xlu0 %1084
  %1088 = vset.pattern.permute.xlu0 0
  %1089 = vperm.xlu0 %1088, %v999
  %v1090 = vpop.permute.xlu0 %1089
  %1093 = vset.pattern.permute.xlu0 0
  %1094 = vperm.xlu0 %1093, %v1000
  %v1095 = vpop.permute.xlu0 %1094
  %1098 = vset.pattern.permute.xlu0 0
  %1099 = vperm.xlu0 %1098, %v1001
  %v1100 = vpop.permute.xlu0 %1099
  %1103 = vset.pattern.permute.xlu0 0
  %1104 = vperm.xlu0 %1103, %v1002
  %v1105 = vpop.permute.xlu0 %1104
  %1108 = vset.pattern.permute.xlu0 0
  %1109 = vperm.xlu0 %1108, %v1003
  %v1110 = vpop.permute.xlu0 %1109
  %1113 = vset.pattern.permute.xlu0 0
  %1114 = vperm.xlu0 %1113, %v1004
  %v1115 = vpop.permute.xlu0 %1114
  %1118 = vset.pattern.permute.xlu0 0
  %1119 = vperm.xlu0 %1118, %v1005
  %v1120 = vpop.permute.xlu0 %1119
  %1123 = vset.pattern.permute.xlu0 0
  %1124 = vperm.xlu0 %1123, %v1006
  %v1125 = vpop.permute.xlu0 %1124
  %1128 = vset.pattern.permute.xlu0 0
  %1129 = vperm.xlu0 %1128, %v1007
  %v1130 = vpop.permute.xlu0 %1129
  %1133 = vset.pattern.permute.xlu0 0
  %1134 = vperm.xlu0 %1133, %v1008
  %v1135 = vpop.permute.xlu0 %1134
  %v1137 = vmul.f32 %v706, %v1060
  %v1138 = vmul.f32 %v709, %v1065
  %v1139 = vmul.f32 %v714, %v1070
  %v1140 = vmul.f32 %v717, %v1075
  %v1141 = vmul.f32 %v722, %v1080
  %v1142 = vmul.f32 %v725, %v1085
  %v1143 = vmul.f32 %v730, %v1090
  %v1144 = vmul.f32 %v733, %v1095
  %v1145 = vmul.f32 %v738, %v1100
  %v1146 = vmul.f32 %v741, %v1105
  %v1147 = vmul.f32 %v746, %v1110
  %v1148 = vmul.f32 %v749, %v1115
  %v1149 = vmul.f32 %v754, %v1120
  %v1150 = vmul.f32 %v757, %v1125
  %v1151 = vmul.f32 %v762, %v1130
  %v1152 = vmul.f32 %v765, %v1135
  %1154 = vset.pattern.permute.xlu0 0
  %1155 = vperm.xlu0 %1154, %v1041
  %v1156 = vpop.permute.xlu0 %1155
  %1159 = vset.pattern.permute.xlu0 0
  %1160 = vperm.xlu0 %1159, %v1042
  %v1161 = vpop.permute.xlu0 %1160
  %1164 = vset.pattern.permute.xlu0 0
  %1165 = vperm.xlu0 %1164, %v1043
  %v1166 = vpop.permute.xlu0 %1165
  %1169 = vset.pattern.permute.xlu0 0
  %1170 = vperm.xlu0 %1169, %v1044
  %v1171 = vpop.permute.xlu0 %1170
  %1174 = vset.pattern.permute.xlu0 0
  %1175 = vperm.xlu0 %1174, %v1045
  %v1176 = vpop.permute.xlu0 %1175
  %1179 = vset.pattern.permute.xlu0 0
  %1180 = vperm.xlu0 %1179, %v1046
  %v1181 = vpop.permute.xlu0 %1180
  %1184 = vset.pattern.permute.xlu0 0
  %1185 = vperm.xlu0 %1184, %v1047
  %v1186 = vpop.permute.xlu0 %1185
  %1189 = vset.pattern.permute.xlu0 0
  %1190 = vperm.xlu0 %1189, %v1048
  %v1191 = vpop.permute.xlu0 %1190
  %1194 = vset.pattern.permute.xlu0 0
  %1195 = vperm.xlu0 %1194, %v1049
  %v1196 = vpop.permute.xlu0 %1195
  %1199 = vset.pattern.permute.xlu0 0
  %1200 = vperm.xlu0 %1199, %v1050
  %v1201 = vpop.permute.xlu0 %1200
  %1204 = vset.pattern.permute.xlu0 0
  %1205 = vperm.xlu0 %1204, %v1051
  %v1206 = vpop.permute.xlu0 %1205
  %1209 = vset.pattern.permute.xlu0 0
  %1210 = vperm.xlu0 %1209, %v1052
  %v1211 = vpop.permute.xlu0 %1210
  %1214 = vset.pattern.permute.xlu0 0
  %1215 = vperm.xlu0 %1214, %v1053
  %v1216 = vpop.permute.xlu0 %1215
  %1219 = vset.pattern.permute.xlu0 0
  %1220 = vperm.xlu0 %1219, %v1054
  %v1221 = vpop.permute.xlu0 %1220
  %1224 = vset.pattern.permute.xlu0 0
  %1225 = vperm.xlu0 %1224, %v1055
  %v1226 = vpop.permute.xlu0 %1225
  %1229 = vset.pattern.permute.xlu0 0
  %1230 = vperm.xlu0 %1229, %v1056
  %v1231 = vpop.permute.xlu0 %1230
  %v1233 = vadd.f32 %v1137, %v1156
  %v1234 = vadd.f32 %v1138, %v1161
  %v1235 = vadd.f32 %v1139, %v1166
  %v1236 = vadd.f32 %v1140, %v1171
  %v1237 = vadd.f32 %v1141, %v1176
  %v1238 = vadd.f32 %v1142, %v1181
  %v1239 = vadd.f32 %v1143, %v1186
  %v1240 = vadd.f32 %v1144, %v1191
  %v1241 = vadd.f32 %v1145, %v1196
  %v1242 = vadd.f32 %v1146, %v1201
  %v1243 = vadd.f32 %v1147, %v1206
  %v1244 = vadd.f32 %v1148, %v1211
  %v1245 = vadd.f32 %v1149, %v1216
  %v1246 = vadd.f32 %v1150, %v1221
  %v1247 = vadd.f32 %v1151, %v1226
  %v1248 = vadd.f32 %v1152, %v1231
  %v1249 = vmax.f32 %v1233, 0.0
  %v1250 = vmax.f32 %v1234, 0.0
  %v1251 = vmax.f32 %v1235, 0.0
  %v1252 = vmax.f32 %v1236, 0.0
  %v1253 = vmax.f32 %v1237, 0.0
  %v1254 = vmax.f32 %v1238, 0.0
  %v1255 = vmax.f32 %v1239, 0.0
  %v1256 = vmax.f32 %v1240, 0.0
  %v1257 = vmax.f32 %v1241, 0.0
  %v1258 = vmax.f32 %v1242, 0.0
  %v1259 = vmax.f32 %v1243, 0.0
  %v1260 = vmax.f32 %v1244, 0.0
  %v1261 = vmax.f32 %v1245, 0.0
  %v1262 = vmax.f32 %v1246, 0.0
  %v1263 = vmax.f32 %v1247, 0.0
  %v1264 = vmax.f32 %v1248, 0.0
  %v1265 = vpack.c.bf16 %v1250, %v1249
  %v1266 = vpack.c.bf16 %v1252, %v1251
  %v1267 = vpack.c.bf16 %v1254, %v1253
  %v1268 = vpack.c.bf16 %v1256, %v1255
  %v1269 = vpack.c.bf16 %v1258, %v1257
  %v1270 = vpack.c.bf16 %v1260, %v1259
  %v1271 = vpack.c.bf16 %v1262, %v1261
  %v1272 = vpack.c.bf16 %v1264, %v1263
  %v1273 = vld [vmem:[%s4] sm:$0xf]
  %v1274 = vld [vmem:[%s4 + $0x4] sm:$0xf]
  %v1275 = vld [vmem:[%s4 + $0x8] sm:$0xf]
  %v1276 = vld [vmem:[%s4 + $0xc] sm:$0xf]
  %v1277 = vld [vmem:[%s4 + $0x10] sm:$0xf]
  %v1278 = vld [vmem:[%s4 + $0x14] sm:$0xf]
  %v1279 = vld [vmem:[%s4 + $0x18] sm:$0xf]
  %v1280 = vld [vmem:[%s4 + $0x1c] sm:$0xf]
  %v1281 = vld [vmem:[%s4 + $0x20] sm:$0xf]
  %v1282 = vld [vmem:[%s4 + $0x24] sm:$0xf]
  %v1283 = vld [vmem:[%s4 + $0x28] sm:$0xf]
  %v1284 = vld [vmem:[%s4 + $0x2c] sm:$0xf]
  %v1285 = vld [vmem:[%s4 + $0x30] sm:$0xf]
  %v1286 = vld [vmem:[%s4 + $0x34] sm:$0xf]
  %v1287 = vld [vmem:[%s4 + $0x38] sm:$0xf]
  %v1288 = vld [vmem:[%s4 + $0x3c] sm:$0xf]
  %v1289 = vld [vmem:[%s4 + $0x40] sm:$0xf]
  %v1290 = vld [vmem:[%s4 + $0x44] sm:$0xf]
  %v1291 = vld [vmem:[%s4 + $0x48] sm:$0xf]
  %v1292 = vld [vmem:[%s4 + $0x4c] sm:$0xf]
  %v1293 = vld [vmem:[%s4 + $0x50] sm:$0xf]
  %v1294 = vld [vmem:[%s4 + $0x54] sm:$0xf]
  %v1295 = vld [vmem:[%s4 + $0x58] sm:$0xf]
  %v1296 = vld [vmem:[%s4 + $0x5c] sm:$0xf]
  %v1297 = vld [vmem:[%s4 + $0x60] sm:$0xf]
  %v1298 = vld [vmem:[%s4 + $0x64] sm:$0xf]
  %v1299 = vld [vmem:[%s4 + $0x68] sm:$0xf]
  %v1300 = vld [vmem:[%s4 + $0x6c] sm:$0xf]
  %v1301 = vld [vmem:[%s4 + $0x70] sm:$0xf]
  %v1302 = vld [vmem:[%s4 + $0x74] sm:$0xf]
  %v1303 = vld [vmem:[%s4 + $0x78] sm:$0xf]
  %v1304 = vld [vmem:[%s4 + $0x7c] sm:$0xf]
  %v1305 = vld [vmem:[%s4 + $0x80] sm:$0xf]
  %v1306 = vld [vmem:[%s4 + $0x84] sm:$0xf]
  %v1307 = vld [vmem:[%s4 + $0x88] sm:$0xf]
  %v1308 = vld [vmem:[%s4 + $0x8c] sm:$0xf]
  %v1345 = vunpack.c.l.b16 %v1273
  %v1346 = vunpack.c.l.b16 %v1274
  %v1347 = vunpack.c.l.b16 %v1275
  %v1348 = vunpack.c.l.b16 %v1276
  %v1349 = vunpack.c.l.b16 %v1277
  %v1350 = vunpack.c.l.b16 %v1278
  %v1351 = vunpack.c.l.b16 %v1279
  %v1352 = vunpack.c.l.b16 %v1280
  %v1353 = vunpack.c.l.b16 %v1281
  %v1354 = vunpack.c.l.b16 %v1282
  %v1355 = vunpack.c.l.b16 %v1283
  %v1356 = vunpack.c.l.b16 %v1284
  %v1357 = vunpack.c.l.b16 %v1285
  %v1358 = vunpack.c.l.b16 %v1286
  %v1359 = vunpack.c.l.b16 %v1287
  %v1360 = vunpack.c.l.b16 %v1288
  %v1361 = vunpack.c.l.b16 %v1289
  %v1362 = vunpack.c.l.b16 %v1290
  %v1363 = vunpack.c.l.b16 %v1291
  %v1364 = vunpack.c.l.b16 %v1292
  %v1365 = vunpack.c.l.b16 %v1293
  %v1366 = vunpack.c.l.b16 %v1294
  %v1367 = vunpack.c.l.b16 %v1295
  %v1368 = vunpack.c.l.b16 %v1296
  %v1369 = vunpack.c.l.b16 %v1297
  %v1370 = vunpack.c.l.b16 %v1298
  %v1371 = vunpack.c.l.b16 %v1299
  %v1372 = vunpack.c.l.b16 %v1300
  %v1373 = vunpack.c.l.b16 %v1301
  %v1374 = vunpack.c.l.b16 %v1302
  %v1375 = vunpack.c.l.b16 %v1303
  %v1376 = vunpack.c.l.b16 %v1304
  %v1377 = vunpack.c.l.b16 %v1305
  %v1378 = vunpack.c.l.b16 %v1306
  %v1379 = vunpack.c.l.b16 %v1307
  %v1380 = vunpack.c.l.b16 %v1308
  %v1381 = vpack.c.b16 %v1346, %v1345
  %v1382 = vpack.c.b16 %v1348, %v1347
  %v1383 = vpack.c.b16 %v1350, %v1349
  %v1384 = vpack.c.b16 %v1352, %v1351
  %v1385 = vpack.c.b16 %v1354, %v1353
  %v1386 = vpack.c.b16 %v1356, %v1355
  %v1387 = vpack.c.b16 %v1358, %v1357
  %v1388 = vpack.c.b16 %v1360, %v1359
  %v1389 = vpack.c.b16 %v1362, %v1361
  %v1390 = vpack.c.b16 %v1364, %v1363
  %v1391 = vpack.c.b16 %v1366, %v1365
  %v1392 = vpack.c.b16 %v1368, %v1367
  %v1393 = vpack.c.b16 %v1370, %v1369
  %v1394 = vpack.c.b16 %v1372, %v1371
  %v1395 = vpack.c.b16 %v1374, %v1373
  %v1396 = vpack.c.b16 %v1376, %v1375
  %v1397 = vpack.c.b16 %v1378, %v1377
  %v1398 = vpack.c.b16 %v1380, %v1379
  %1417 = vmatprep.subr.bf16.mxu0 0
  %1418 = vmatpush1.bf16.msra.mxu0 %v1272
  %1419 = vmatprep.subr.bf16.mxu0 0
  %1420 = vmatpush1.bf16.msra.mxu0 %v1271
  %1421 = vmatprep.subr.bf16.mxu0 0
  %1422 = vmatpush1.bf16.msra.mxu0 %v1270
  %1423 = vmatprep.subr.bf16.mxu0 0
  %1424 = vmatpush1.bf16.msra.mxu0 %v1269
  %1425 = vmatprep.subr.bf16.mxu0 0
  %1426 = vmatpush1.bf16.msra.mxu0 %v1268
  %1427 = vmatprep.subr.bf16.mxu0 0
  %1428 = vmatpush1.bf16.msra.mxu0 %v1267
  %1429 = vmatprep.subr.bf16.mxu0 0
  %1430 = vmatpush1.bf16.msra.mxu0 %v1266
  %1431 = vmatprep.subr.bf16.mxu0 0
  %1432 = vmatpush1.bf16.msra.mxu0 %v1265
  %1433 = vmatprep.subr.bf16.mxu0 0
  %1434 = vmatpush2.bf16.msra.mxu0 0
  %1435 = vmatprep.subr.bf16.mxu0 0
  %1436 = vmatpush2.bf16.msra.mxu0 0
  %1437 = vmatprep.subr.bf16.mxu0 0
  %1438 = vmatpush2.bf16.msra.mxu0 0
  %1439 = vmatprep.subr.bf16.mxu0 0
  %1440 = vmatpush2.bf16.msra.mxu0 0
  %1441 = vmatprep.subr.bf16.mxu0 0
  %1442 = vmatpush2.bf16.msra.mxu0 0
  %1443 = vmatprep.subr.bf16.mxu0 0
  %1444 = vmatpush2.bf16.msra.mxu0 0
  %1445 = vmatprep.subr.bf16.mxu0 0
  %1446 = vmatpush2.bf16.msra.mxu0 0
  %1447 = vmatprep.subr.bf16.mxu0 0
  %1448 = vmatpush2.bf16.msra.mxu0 0
  %1449 = vmatprep.mubr.bf16.mxu0 0
  %1450 = vmatmul.mubr.bf16.gmra.mxu0 %v1381
  %v1451 = vpop.f32.mrf.mxu0
  %v1452 = vadd.f32 0.0, %v1451
  %v1453 = vpop.f32.mrf.mxu0
  %v1454 = vpop.f32.mrf.mxu0
  %v1455 = vadd.f32 0.0, %v1454
  %v1456 = vpop.f32.mrf.mxu0
  %1457 = vmatprep.mubr.bf16.mxu0 0
  %1458 = vmatmul.mubr.bf16.gmra.mxu0 %v1382
  %v1459 = vpop.f32.mrf.mxu0
  %v1460 = vadd.f32 0.0, %v1459
  %v1461 = vpop.f32.mrf.mxu0
  %v1462 = vpop.f32.mrf.mxu0
  %v1463 = vadd.f32 0.0, %v1462
  %v1464 = vpop.f32.mrf.mxu0
  %1465 = vmatprep.mubr.bf16.mxu0 0
  %1466 = vmatmul.mubr.bf16.gmra.mxu0 %v1383
  %v1467 = vpop.f32.mrf.mxu0
  %v1468 = vadd.f32 0.0, %v1467
  %v1469 = vpop.f32.mrf.mxu0
  %v1470 = vpop.f32.mrf.mxu0
  %v1471 = vadd.f32 0.0, %v1470
  %v1472 = vpop.f32.mrf.mxu0
  %1473 = vmatprep.mubr.bf16.mxu0 0
  %1474 = vmatmul.mubr.bf16.gmra.mxu0 %v1384
  %v1475 = vpop.f32.mrf.mxu0
  %v1476 = vadd.f32 0.0, %v1475
  %v1477 = vpop.f32.mrf.mxu0
  %v1478 = vpop.f32.mrf.mxu0
  %v1479 = vadd.f32 0.0, %v1478
  %v1480 = vpop.f32.mrf.mxu0
  %1481 = vmatprep.mubr.bf16.mxu0 0
  %1482 = vmatmul.mubr.bf16.gmra.mxu0 %v1385
  %v1483 = vpop.f32.mrf.mxu0
  %v1484 = vadd.f32 0.0, %v1483
  %v1485 = vpop.f32.mrf.mxu0
  %v1486 = vpop.f32.mrf.mxu0
  %v1487 = vadd.f32 0.0, %v1486
  %v1488 = vpop.f32.mrf.mxu0
  %1489 = vmatprep.mubr.bf16.mxu0 0
  %1490 = vmatmul.mubr.bf16.gmra.mxu0 %v1386
  %v1491 = vpop.f32.mrf.mxu0
  %v1492 = vadd.f32 0.0, %v1491
  %v1493 = vpop.f32.mrf.mxu0
  %v1494 = vpop.f32.mrf.mxu0
  %v1495 = vadd.f32 0.0, %v1494
  %v1496 = vpop.f32.mrf.mxu0
  %1497 = vmatprep.mubr.bf16.mxu0 0
  %1498 = vmatmul.mubr.bf16.gmra.mxu0 %v1387
  %v1499 = vpop.f32.mrf.mxu0
  %v1500 = vadd.f32 0.0, %v1499
  %v1501 = vpop.f32.mrf.mxu0
  %v1502 = vpop.f32.mrf.mxu0
  %v1503 = vadd.f32 0.0, %v1502
  %v1504 = vpop.f32.mrf.mxu0
  %1505 = vmatprep.mubr.bf16.mxu0 0
  %1506 = vmatmul.mubr.bf16.gmra.mxu0 %v1388
  %v1507 = vpop.f32.mrf.mxu0
  %v1508 = vadd.f32 0.0, %v1507
  %v1509 = vpop.f32.mrf.mxu0
  %v1510 = vpop.f32.mrf.mxu0
  %v1511 = vadd.f32 0.0, %v1510
  %v1512 = vpop.f32.mrf.mxu0
  %1513 = vmatprep.mubr.bf16.mxu0 0
  %1514 = vmatmul.mubr.bf16.gmra.mxu0 %v1389
  %v1515 = vpop.f32.mrf.mxu0
  %v1516 = vadd.f32 0.0, %v1515
  %v1517 = vpop.f32.mrf.mxu0
  %v1518 = vpop.f32.mrf.mxu0
  %v1519 = vadd.f32 0.0, %v1518
  %v1520 = vpop.f32.mrf.mxu0
  %1521 = vmatprep.mubr.bf16.mxu0 0
  %1522 = vmatmul.mubr.bf16.gmra.mxu0 %v1390
  %v1523 = vpop.f32.mrf.mxu0
  %v1524 = vadd.f32 0.0, %v1523
  %v1525 = vpop.f32.mrf.mxu0
  %v1526 = vpop.f32.mrf.mxu0
  %v1527 = vadd.f32 0.0, %v1526
  %v1528 = vpop.f32.mrf.mxu0
  %1529 = vmatprep.mubr.bf16.mxu0 0
  %1530 = vmatmul.mubr.bf16.gmra.mxu0 %v1391
  %v1531 = vpop.f32.mrf.mxu0
  %v1532 = vadd.f32 0.0, %v1531
  %v1533 = vpop.f32.mrf.mxu0
  %v1534 = vpop.f32.mrf.mxu0
  %v1535 = vadd.f32 0.0, %v1534
  %v1536 = vpop.f32.mrf.mxu0
  %1537 = vmatprep.mubr.bf16.mxu0 0
  %1538 = vmatmul.mubr.bf16.gmra.mxu0 %v1392
  %v1539 = vpop.f32.mrf.mxu0
  %v1540 = vadd.f32 0.0, %v1539
  %v1541 = vpop.f32.mrf.mxu0
  %v1542 = vpop.f32.mrf.mxu0
  %v1543 = vadd.f32 0.0, %v1542
  %v1544 = vpop.f32.mrf.mxu0
  %1545 = vmatprep.mubr.bf16.mxu0 0
  %1546 = vmatmul.mubr.bf16.gmra.mxu0 %v1393
  %v1547 = vpop.f32.mrf.mxu0
  %v1548 = vadd.f32 0.0, %v1547
  %v1549 = vpop.f32.mrf.mxu0
  %v1550 = vpop.f32.mrf.mxu0
  %v1551 = vadd.f32 0.0, %v1550
  %v1552 = vpop.f32.mrf.mxu0
  %1553 = vmatprep.mubr.bf16.mxu0 0
  %1554 = vmatmul.mubr.bf16.gmra.mxu0 %v1394
  %v1555 = vpop.f32.mrf.mxu0
  %v1556 = vadd.f32 0.0, %v1555
  %v1557 = vpop.f32.mrf.mxu0
  %v1558 = vpop.f32.mrf.mxu0
  %v1559 = vadd.f32 0.0, %v1558
  %v1560 = vpop.f32.mrf.mxu0
  %1561 = vmatprep.mubr.bf16.mxu0 0
  %1562 = vmatmul.mubr.bf16.gmra.mxu0 %v1395
  %v1563 = vpop.f32.mrf.mxu0
  %v1564 = vadd.f32 0.0, %v1563
  %v1565 = vpop.f32.mrf.mxu0
  %v1566 = vpop.f32.mrf.mxu0
  %v1567 = vadd.f32 0.0, %v1566
  %v1568 = vpop.f32.mrf.mxu0
  %1569 = vmatprep.mubr.bf16.mxu0 0
  %1570 = vmatmul.mubr.bf16.gmra.mxu0 %v1396
  %v1571 = vpop.f32.mrf.mxu0
  %v1572 = vadd.f32 0.0, %v1571
  %v1573 = vpop.f32.mrf.mxu0
  %v1574 = vpop.f32.mrf.mxu0
  %v1575 = vadd.f32 0.0, %v1574
  %v1576 = vpop.f32.mrf.mxu0
  %1577 = vmatprep.mubr.bf16.mxu0 0
  %1578 = vmatmul.mubr.bf16.gmra.mxu0 %v1397
  %v1579 = vpop.f32.mrf.mxu0
  %v1580 = vadd.f32 0.0, %v1579
  %v1581 = vpop.f32.mrf.mxu0
  %v1582 = vpop.f32.mrf.mxu0
  %v1583 = vadd.f32 0.0, %v1582
  %v1584 = vpop.f32.mrf.mxu0
  %1585 = vmatprep.mubr.bf16.mxu0 0
  %1586 = vmatmul.mubr.bf16.gmra.mxu0 %v1398
  %v1587 = vpop.f32.mrf.mxu0
  %v1588 = vadd.f32 0.0, %v1587
  %v1589 = vpop.f32.mrf.mxu0
  %v1590 = vpop.f32.mrf.mxu0
  %v1591 = vadd.f32 0.0, %v1590
  %v1592 = vpop.f32.mrf.mxu0
  %1593 = vdwg.mxu0
  %v1594 = vld [vmem:[%s5] sm:$0xff]
  %v1595 = vld [vmem:[%s5 + $0x8] sm:$0xff]
  %v1596 = vld [vmem:[%s5 + $0x10] sm:$0xff]
  %v1597 = vld [vmem:[%s5 + $0x18] sm:$0xff]
  %v1598 = vld [vmem:[%s5 + $0x20] sm:$0xff]
  %v1599 = vld [vmem:[%s5 + $0x28] sm:$0xff]
  %v1600 = vld [vmem:[%s5 + $0x30] sm:$0x1]
  %s1601 = scalar_lea.vmem %s5, 56
  %v1602 = vld [vmem:[%s1601] sm:$0xff]
  %v1603 = vld [vmem:[%s1601 + $0x8] sm:$0xff]
  %v1604 = vld [vmem:[%s1601 + $0x10] sm:$0xff]
  %v1605 = vld [vmem:[%s1601 + $0x18] sm:$0xff]
  %v1606 = vld [vmem:[%s1601 + $0x20] sm:$0xff]
  %v1607 = vld [vmem:[%s1601 + $0x28] sm:$0xff]
  %v1608 = vld [vmem:[%s1601 + $0x30] sm:$0x1]
  %v1610 = vsel %vm784, %v1468, 0
  %v1613 = vsel %vm784, %v1471, 0
  %v1616 = vsel %vm784, %v1476, 0
  %v1619 = vsel %vm784, %v1479, 0
  %vm1621 = vcmask 1040384
  %v1623 = vsel %vm1621, %v1608, 0
  %1625 = vmatprep.subr.mxu0 0.0
  %1626 = vmatpush1.msra.mxu0 0.0
  %1627 = vmatprep.subr.mxu0 0.0
  %1628 = vmatpush1.msra.mxu0 0.0
  %1629 = vmatprep.subr.mxu0 0.0
  %1630 = vmatpush1.msra.mxu0 0.0
  %1631 = vmatprep.subr.mxu0 0.0
  %1632 = vmatpush1.msra.mxu0 0.0
  %1633 = vmatprep.subr.mxu0 0.0
  %1634 = vmatpush1.msra.mxu0 0.0
  %1635 = vmatprep.subr.mxu0 0.0
  %1636 = vmatpush1.msra.mxu0 0.0
  %1637 = vmatprep.subr.mxu0 0.0
  %1638 = vmatpush1.msra.mxu0 0.0
  %1639 = vmatprep.subr.mxu0 0.0
  %1640 = vmatpush1.msra.mxu0 0.0
  %1641 = vmatprep.subr.mxu0 0.0
  %1642 = vmatpush1.msra.mxu0 0.0
  %1643 = vmatprep.subr.mxu0 0.0
  %1644 = vmatpush1.msra.mxu0 %v1623
  %1645 = vmatprep.subr.mxu0 0.0
  %1646 = vmatpush1.msra.mxu0 %v1607
  %1647 = vmatprep.subr.mxu0 0.0
  %1648 = vmatpush1.msra.mxu0 %v1606
  %1649 = vmatprep.subr.mxu0 0.0
  %1650 = vmatpush1.msra.mxu0 %v1605
  %1651 = vmatprep.subr.mxu0 0.0
  %1652 = vmatpush1.msra.mxu0 %v1604
  %1653 = vmatprep.subr.mxu0 0.0
  %1654 = vmatpush1.msra.mxu0 %v1603
  %1655 = vmatprep.subr.mxu0 0.0
  %1656 = vmatpush1.msra.mxu0 %v1602
  %1657 = vmatprep.subr.mxu0 0.0
  %1658 = vmatpush2.msra.mxu0 0.0
  %1659 = vmatprep.subr.mxu0 0.0
  %1660 = vmatpush2.msra.mxu0 0.0
  %1661 = vmatprep.subr.mxu0 0.0
  %1662 = vmatpush2.msra.mxu0 0.0
  %1663 = vmatprep.subr.mxu0 0.0
  %1664 = vmatpush2.msra.mxu0 0.0
  %1665 = vmatprep.subr.mxu0 0.0
  %1666 = vmatpush2.msra.mxu0 0.0
  %1667 = vmatprep.subr.mxu0 0.0
  %1668 = vmatpush2.msra.mxu0 0.0
  %1669 = vmatprep.subr.mxu0 0.0
  %1670 = vmatpush2.msra.mxu0 0.0
  %1671 = vmatprep.subr.mxu0 0.0
  %1672 = vmatpush2.msra.mxu0 0.0
  %1673 = vmatprep.subr.mxu0 0.0
  %1674 = vmatpush2.msra.mxu0 0.0
  %1675 = vmatprep.subr.mxu0 0.0
  %1676 = vmatpush2.msra.mxu0 0.0
  %1677 = vmatprep.subr.mxu0 0.0
  %1678 = vmatpush2.msra.mxu0 0.0
  %1679 = vmatprep.subr.mxu0 0.0
  %1680 = vmatpush2.msra.mxu0 0.0
  %1681 = vmatprep.subr.mxu0 0.0
  %1682 = vmatpush2.msra.mxu0 0.0
  %1683 = vmatprep.subr.mxu0 0.0
  %1684 = vmatpush2.msra.mxu0 0.0
  %1685 = vmatprep.subr.mxu0 0.0
  %1686 = vmatpush2.msra.mxu0 0.0
  %1687 = vmatprep.subr.mxu0 0.0
  %1688 = vmatpush2.msra.mxu0 0.0
  %1689 = vmatprep.mubr.f32.mxu0 0.0
  %1690 = vmatmul.mubr.f32.gmra.mxu0 %v1610
  %v1691 = vpop.f32.mrf.mxu0
  %v1692 = vadd.f32 0.0, %v1691
  %v1693 = vpop.f32.mrf.mxu0
  %1694 = vmatprep.mubr.f32.mxu0 0.0
  %1695 = vmatmul.mubr.f32.gmra.mxu0 %v1613
  %v1696 = vpop.f32.mrf.mxu0
  %v1697 = vadd.f32 0.0, %v1696
  %v1698 = vpop.f32.mrf.mxu0
  %1699 = vmatprep.mubr.f32.mxu0 0.0
  %1700 = vmatmul.mubr.f32.gmra.mxu0 %v1616
  %v1701 = vpop.f32.mrf.mxu0
  %v1702 = vadd.f32 0.0, %v1701
  %v1703 = vpop.f32.mrf.mxu0
  %1704 = vmatprep.mubr.f32.mxu0 0.0
  %1705 = vmatmul.mubr.f32.gmra.mxu0 %v1619
  %v1706 = vpop.f32.mrf.mxu0
  %v1707 = vadd.f32 0.0, %v1706
  %v1708 = vpop.f32.mrf.mxu0
  %1709 = vdwg.mxu0
  %v1711 = vsel %vm784, %v1452, 0
  %v1714 = vsel %vm784, %v1455, 0
  %v1717 = vsel %vm784, %v1460, 0
  %v1720 = vsel %vm784, %v1463, 0
  %v1723 = vsel %vm1621, %v1600, 0
  %1725 = vmatprep.subr.mxu0 0.0
  %1726 = vmatpush1.msra.mxu0 0.0
  %1727 = vmatprep.subr.mxu0 0.0
  %1728 = vmatpush1.msra.mxu0 0.0
  %1729 = vmatprep.subr.mxu0 0.0
  %1730 = vmatpush1.msra.mxu0 0.0
  %1731 = vmatprep.subr.mxu0 0.0
  %1732 = vmatpush1.msra.mxu0 0.0
  %1733 = vmatprep.subr.mxu0 0.0
  %1734 = vmatpush1.msra.mxu0 0.0
  %1735 = vmatprep.subr.mxu0 0.0
  %1736 = vmatpush1.msra.mxu0 0.0
  %1737 = vmatprep.subr.mxu0 0.0
  %1738 = vmatpush1.msra.mxu0 0.0
  %1739 = vmatprep.subr.mxu0 0.0
  %1740 = vmatpush1.msra.mxu0 0.0
  %1741 = vmatprep.subr.mxu0 0.0
  %1742 = vmatpush1.msra.mxu0 0.0
  %1743 = vmatprep.subr.mxu0 0.0
  %1744 = vmatpush1.msra.mxu0 %v1723
  %1745 = vmatprep.subr.mxu0 0.0
  %1746 = vmatpush1.msra.mxu0 %v1599
  %1747 = vmatprep.subr.mxu0 0.0
  %1748 = vmatpush1.msra.mxu0 %v1598
  %1749 = vmatprep.subr.mxu0 0.0
  %1750 = vmatpush1.msra.mxu0 %v1597
  %1751 = vmatprep.subr.mxu0 0.0
  %1752 = vmatpush1.msra.mxu0 %v1596
  %1753 = vmatprep.subr.mxu0 0.0
  %1754 = vmatpush1.msra.mxu0 %v1595
  %1755 = vmatprep.subr.mxu0 0.0
  %1756 = vmatpush1.msra.mxu0 %v1594
  %1757 = vmatprep.subr.mxu0 0.0
  %1758 = vmatpush2.msra.mxu0 0.0
  %1759 = vmatprep.subr.mxu0 0.0
  %1760 = vmatpush2.msra.mxu0 0.0
  %1761 = vmatprep.subr.mxu0 0.0
  %1762 = vmatpush2.msra.mxu0 0.0
  %1763 = vmatprep.subr.mxu0 0.0
  %1764 = vmatpush2.msra.mxu0 0.0
  %1765 = vmatprep.subr.mxu0 0.0
  %1766 = vmatpush2.msra.mxu0 0.0
  %1767 = vmatprep.subr.mxu0 0.0
  %1768 = vmatpush2.msra.mxu0 0.0
  %1769 = vmatprep.subr.mxu0 0.0
  %1770 = vmatpush2.msra.mxu0 0.0
  %1771 = vmatprep.subr.mxu0 0.0
  %1772 = vmatpush2.msra.mxu0 0.0
  %1773 = vmatprep.subr.mxu0 0.0
  %1774 = vmatpush2.msra.mxu0 0.0
  %1775 = vmatprep.subr.mxu0 0.0
  %1776 = vmatpush2.msra.mxu0 0.0
  %1777 = vmatprep.subr.mxu0 0.0
  %1778 = vmatpush2.msra.mxu0 0.0
  %1779 = vmatprep.subr.mxu0 0.0
  %1780 = vmatpush2.msra.mxu0 0.0
  %1781 = vmatprep.subr.mxu0 0.0
  %1782 = vmatpush2.msra.mxu0 0.0
  %1783 = vmatprep.subr.mxu0 0.0
  %1784 = vmatpush2.msra.mxu0 0.0
  %1785 = vmatprep.subr.mxu0 0.0
  %1786 = vmatpush2.msra.mxu0 0.0
  %1787 = vmatprep.subr.mxu0 0.0
  %1788 = vmatpush2.msra.mxu0 0.0
  %1789 = vmatprep.mubr.f32.mxu0 0.0
  %1790 = vmatmul.mubr.f32.gmra.mxu0 %v1711
  %v1791 = vpop.f32.mrf.mxu0
  %v1792 = vadd.f32 %v1692, %v1791
  %v1793 = vpop.f32.mrf.mxu0
  %1794 = vmatprep.mubr.f32.mxu0 0.0
  %1795 = vmatmul.mubr.f32.gmra.mxu0 %v1714
  %v1796 = vpop.f32.mrf.mxu0
  %v1797 = vadd.f32 %v1697, %v1796
  %v1798 = vpop.f32.mrf.mxu0
  %1799 = vmatprep.mubr.f32.mxu0 0.0
  %1800 = vmatmul.mubr.f32.gmra.mxu0 %v1717
  %v1801 = vpop.f32.mrf.mxu0
  %v1802 = vadd.f32 %v1702, %v1801
  %v1803 = vpop.f32.mrf.mxu0
  %1804 = vmatprep.mubr.f32.mxu0 0.0
  %1805 = vmatmul.mubr.f32.gmra.mxu0 %v1720
  %v1806 = vpop.f32.mrf.mxu0
  %v1807 = vadd.f32 %v1707, %v1806
  %v1808 = vpop.f32.mrf.mxu0
  %1809 = vdwg.mxu0
  %s1810 = scalar_lea.vmem %s5, 112
  %v1811 = vld [vmem:[%s1810] sm:$0xff]
  %v1812 = vld [vmem:[%s1810 + $0x8] sm:$0xff]
  %v1813 = vld [vmem:[%s1810 + $0x10] sm:$0xff]
  %v1814 = vld [vmem:[%s1810 + $0x18] sm:$0xff]
  %v1815 = vld [vmem:[%s1810 + $0x20] sm:$0xff]
  %v1816 = vld [vmem:[%s1810 + $0x28] sm:$0xff]
  %v1817 = vld [vmem:[%s1810 + $0x30] sm:$0x1]
  %v1819 = vsel %vm784, %v1484, 0
  %v1822 = vsel %vm784, %v1487, 0
  %v1825 = vsel %vm784, %v1492, 0
  %v1828 = vsel %vm784, %v1495, 0
  %v1831 = vsel %vm1621, %v1817, 0
  %1833 = vmatprep.subr.mxu0 0.0
  %1834 = vmatpush1.msra.mxu0 0.0
  %1835 = vmatprep.subr.mxu0 0.0
  %1836 = vmatpush1.msra.mxu0 0.0
  %1837 = vmatprep.subr.mxu0 0.0
  %1838 = vmatpush1.msra.mxu0 0.0
  %1839 = vmatprep.subr.mxu0 0.0
  %1840 = vmatpush1.msra.mxu0 0.0
  %1841 = vmatprep.subr.mxu0 0.0
  %1842 = vmatpush1.msra.mxu0 0.0
  %1843 = vmatprep.subr.mxu0 0.0
  %1844 = vmatpush1.msra.mxu0 0.0
  %1845 = vmatprep.subr.mxu0 0.0
  %1846 = vmatpush1.msra.mxu0 0.0
  %1847 = vmatprep.subr.mxu0 0.0
  %1848 = vmatpush1.msra.mxu0 0.0
  %1849 = vmatprep.subr.mxu0 0.0
  %1850 = vmatpush1.msra.mxu0 0.0
  %1851 = vmatprep.subr.mxu0 0.0
  %1852 = vmatpush1.msra.mxu0 %v1831
  %1853 = vmatprep.subr.mxu0 0.0
  %1854 = vmatpush1.msra.mxu0 %v1816
  %1855 = vmatprep.subr.mxu0 0.0
  %1856 = vmatpush1.msra.mxu0 %v1815
  %1857 = vmatprep.subr.mxu0 0.0
  %1858 = vmatpush1.msra.mxu0 %v1814
  %1859 = vmatprep.subr.mxu0 0.0
  %1860 = vmatpush1.msra.mxu0 %v1813
  %1861 = vmatprep.subr.mxu0 0.0
  %1862 = vmatpush1.msra.mxu0 %v1812
  %1863 = vmatprep.subr.mxu0 0.0
  %1864 = vmatpush1.msra.mxu0 %v1811
  %1865 = vmatprep.subr.mxu0 0.0
  %1866 = vmatpush2.msra.mxu0 0.0
  %1867 = vmatprep.subr.mxu0 0.0
  %1868 = vmatpush2.msra.mxu0 0.0
  %1869 = vmatprep.subr.mxu0 0.0
  %1870 = vmatpush2.msra.mxu0 0.0
  %1871 = vmatprep.subr.mxu0 0.0
  %1872 = vmatpush2.msra.mxu0 0.0
  %1873 = vmatprep.subr.mxu0 0.0
  %1874 = vmatpush2.msra.mxu0 0.0
  %1875 = vmatprep.subr.mxu0 0.0
  %1876 = vmatpush2.msra.mxu0 0.0
  %1877 = vmatprep.subr.mxu0 0.0
  %1878 = vmatpush2.msra.mxu0 0.0
  %1879 = vmatprep.subr.mxu0 0.0
  %1880 = vmatpush2.msra.mxu0 0.0
  %1881 = vmatprep.subr.mxu0 0.0
  %1882 = vmatpush2.msra.mxu0 0.0
  %1883 = vmatprep.subr.mxu0 0.0
  %1884 = vmatpush2.msra.mxu0 0.0
  %1885 = vmatprep.subr.mxu0 0.0
  %1886 = vmatpush2.msra.mxu0 0.0
  %1887 = vmatprep.subr.mxu0 0.0
  %1888 = vmatpush2.msra.mxu0 0.0
  %1889 = vmatprep.subr.mxu0 0.0
  %1890 = vmatpush2.msra.mxu0 0.0
  %1891 = vmatprep.subr.mxu0 0.0
  %1892 = vmatpush2.msra.mxu0 0.0
  %1893 = vmatprep.subr.mxu0 0.0
  %1894 = vmatpush2.msra.mxu0 0.0
  %1895 = vmatprep.subr.mxu0 0.0
  %1896 = vmatpush2.msra.mxu0 0.0
  %1897 = vmatprep.mubr.f32.mxu0 0.0
  %1898 = vmatmul.mubr.f32.gmra.mxu0 %v1819
  %v1899 = vpop.f32.mrf.mxu0
  %v1900 = vadd.f32 0.0, %v1899
  %v1901 = vpop.f32.mrf.mxu0
  %1902 = vmatprep.mubr.f32.mxu0 0.0
  %1903 = vmatmul.mubr.f32.gmra.mxu0 %v1822
  %v1904 = vpop.f32.mrf.mxu0
  %v1905 = vadd.f32 0.0, %v1904
  %v1906 = vpop.f32.mrf.mxu0
  %1907 = vmatprep.mubr.f32.mxu0 0.0
  %1908 = vmatmul.mubr.f32.gmra.mxu0 %v1825
  %v1909 = vpop.f32.mrf.mxu0
  %v1910 = vadd.f32 0.0, %v1909
  %v1911 = vpop.f32.mrf.mxu0
  %1912 = vmatprep.mubr.f32.mxu0 0.0
  %1913 = vmatmul.mubr.f32.gmra.mxu0 %v1828
  %v1914 = vpop.f32.mrf.mxu0
  %v1915 = vadd.f32 0.0, %v1914
  %v1916 = vpop.f32.mrf.mxu0
  %1917 = vdwg.mxu0
  %v1918 = vadd.f32 %v1792, %v1900
  %v1919 = vadd.f32 %v1797, %v1905
  %v1920 = vadd.f32 %v1802, %v1910
  %v1921 = vadd.f32 %v1807, %v1915
  %s1922 = scalar_lea.vmem %s5, 168
  %v1923 = vld [vmem:[%s1922] sm:$0xff]
  %v1924 = vld [vmem:[%s1922 + $0x8] sm:$0xff]
  %v1925 = vld [vmem:[%s1922 + $0x10] sm:$0xff]
  %v1926 = vld [vmem:[%s1922 + $0x18] sm:$0xff]
  %v1927 = vld [vmem:[%s1922 + $0x20] sm:$0xff]
  %v1928 = vld [vmem:[%s1922 + $0x28] sm:$0xff]
  %v1929 = vld [vmem:[%s1922 + $0x30] sm:$0x1]
  %v1931 = vsel %vm784, %v1500, 0
  %v1934 = vsel %vm784, %v1503, 0
  %v1937 = vsel %vm784, %v1508, 0
  %v1940 = vsel %vm784, %v1511, 0
  %v1943 = vsel %vm1621, %v1929, 0
  %1945 = vmatprep.subr.mxu0 0.0
  %1946 = vmatpush1.msra.mxu0 0.0
  %1947 = vmatprep.subr.mxu0 0.0
  %1948 = vmatpush1.msra.mxu0 0.0
  %1949 = vmatprep.subr.mxu0 0.0
  %1950 = vmatpush1.msra.mxu0 0.0
  %1951 = vmatprep.subr.mxu0 0.0
  %1952 = vmatpush1.msra.mxu0 0.0
  %1953 = vmatprep.subr.mxu0 0.0
  %1954 = vmatpush1.msra.mxu0 0.0
  %1955 = vmatprep.subr.mxu0 0.0
  %1956 = vmatpush1.msra.mxu0 0.0
  %1957 = vmatprep.subr.mxu0 0.0
  %1958 = vmatpush1.msra.mxu0 0.0
  %1959 = vmatprep.subr.mxu0 0.0
  %1960 = vmatpush1.msra.mxu0 0.0
  %1961 = vmatprep.subr.mxu0 0.0
  %1962 = vmatpush1.msra.mxu0 0.0
  %1963 = vmatprep.subr.mxu0 0.0
  %1964 = vmatpush1.msra.mxu0 %v1943
  %1965 = vmatprep.subr.mxu0 0.0
  %1966 = vmatpush1.msra.mxu0 %v1928
  %1967 = vmatprep.subr.mxu0 0.0
  %1968 = vmatpush1.msra.mxu0 %v1927
  %1969 = vmatprep.subr.mxu0 0.0
  %1970 = vmatpush1.msra.mxu0 %v1926
  %1971 = vmatprep.subr.mxu0 0.0
  %1972 = vmatpush1.msra.mxu0 %v1925
  %1973 = vmatprep.subr.mxu0 0.0
  %1974 = vmatpush1.msra.mxu0 %v1924
  %1975 = vmatprep.subr.mxu0 0.0
  %1976 = vmatpush1.msra.mxu0 %v1923
  %1977 = vmatprep.subr.mxu0 0.0
  %1978 = vmatpush2.msra.mxu0 0.0
  %1979 = vmatprep.subr.mxu0 0.0
  %1980 = vmatpush2.msra.mxu0 0.0
  %1981 = vmatprep.subr.mxu0 0.0
  %1982 = vmatpush2.msra.mxu0 0.0
  %1983 = vmatprep.subr.mxu0 0.0
  %1984 = vmatpush2.msra.mxu0 0.0
  %1985 = vmatprep.subr.mxu0 0.0
  %1986 = vmatpush2.msra.mxu0 0.0
  %1987 = vmatprep.subr.mxu0 0.0
  %1988 = vmatpush2.msra.mxu0 0.0
  %1989 = vmatprep.subr.mxu0 0.0
  %1990 = vmatpush2.msra.mxu0 0.0
  %1991 = vmatprep.subr.mxu0 0.0
  %1992 = vmatpush2.msra.mxu0 0.0
  %1993 = vmatprep.subr.mxu0 0.0
  %1994 = vmatpush2.msra.mxu0 0.0
  %1995 = vmatprep.subr.mxu0 0.0
  %1996 = vmatpush2.msra.mxu0 0.0
  %1997 = vmatprep.subr.mxu0 0.0
  %1998 = vmatpush2.msra.mxu0 0.0
  %1999 = vmatprep.subr.mxu0 0.0
  %2000 = vmatpush2.msra.mxu0 0.0
  %2001 = vmatprep.subr.mxu0 0.0
  %2002 = vmatpush2.msra.mxu0 0.0
  %2003 = vmatprep.subr.mxu0 0.0
  %2004 = vmatpush2.msra.mxu0 0.0
  %2005 = vmatprep.subr.mxu0 0.0
  %2006 = vmatpush2.msra.mxu0 0.0
  %2007 = vmatprep.subr.mxu0 0.0
  %2008 = vmatpush2.msra.mxu0 0.0
  %2009 = vmatprep.mubr.f32.mxu0 0.0
  %2010 = vmatmul.mubr.f32.gmra.mxu0 %v1931
  %v2011 = vpop.f32.mrf.mxu0
  %v2012 = vadd.f32 0.0, %v2011
  %v2013 = vpop.f32.mrf.mxu0
  %2014 = vmatprep.mubr.f32.mxu0 0.0
  %2015 = vmatmul.mubr.f32.gmra.mxu0 %v1934
  %v2016 = vpop.f32.mrf.mxu0
  %v2017 = vadd.f32 0.0, %v2016
  %v2018 = vpop.f32.mrf.mxu0
  %2019 = vmatprep.mubr.f32.mxu0 0.0
  %2020 = vmatmul.mubr.f32.gmra.mxu0 %v1937
  %v2021 = vpop.f32.mrf.mxu0
  %v2022 = vadd.f32 0.0, %v2021
  %v2023 = vpop.f32.mrf.mxu0
  %2024 = vmatprep.mubr.f32.mxu0 0.0
  %2025 = vmatmul.mubr.f32.gmra.mxu0 %v1940
  %v2026 = vpop.f32.mrf.mxu0
  %v2027 = vadd.f32 0.0, %v2026
  %v2028 = vpop.f32.mrf.mxu0
  %2029 = vdwg.mxu0
  %v2030 = vadd.f32 %v1918, %v2012
  %v2031 = vadd.f32 %v1919, %v2017
  %v2032 = vadd.f32 %v1920, %v2022
  %v2033 = vadd.f32 %v1921, %v2027
  %s2034 = scalar_lea.vmem %s5, 224
  %v2035 = vld [vmem:[%s2034] sm:$0xff]
  %v2036 = vld [vmem:[%s2034 + $0x8] sm:$0xff]
  %v2037 = vld [vmem:[%s2034 + $0x10] sm:$0xff]
  %v2038 = vld [vmem:[%s2034 + $0x18] sm:$0xff]
  %v2039 = vld [vmem:[%s2034 + $0x20] sm:$0xff]
  %v2040 = vld [vmem:[%s2034 + $0x28] sm:$0xff]
  %v2041 = vld [vmem:[%s2034 + $0x30] sm:$0x1]
  %v2043 = vsel %vm784, %v1516, 0
  %v2046 = vsel %vm784, %v1519, 0
  %v2049 = vsel %vm784, %v1524, 0
  %v2052 = vsel %vm784, %v1527, 0
  %v2055 = vsel %vm1621, %v2041, 0
  %2057 = vmatprep.subr.mxu0 0.0
  %2058 = vmatpush1.msra.mxu0 0.0
  %2059 = vmatprep.subr.mxu0 0.0
  %2060 = vmatpush1.msra.mxu0 0.0
  %2061 = vmatprep.subr.mxu0 0.0
  %2062 = vmatpush1.msra.mxu0 0.0
  %2063 = vmatprep.subr.mxu0 0.0
  %2064 = vmatpush1.msra.mxu0 0.0
  %2065 = vmatprep.subr.mxu0 0.0
  %2066 = vmatpush1.msra.mxu0 0.0
  %2067 = vmatprep.subr.mxu0 0.0
  %2068 = vmatpush1.msra.mxu0 0.0
  %2069 = vmatprep.subr.mxu0 0.0
  %2070 = vmatpush1.msra.mxu0 0.0
  %2071 = vmatprep.subr.mxu0 0.0
  %2072 = vmatpush1.msra.mxu0 0.0
  %2073 = vmatprep.subr.mxu0 0.0
  %2074 = vmatpush1.msra.mxu0 0.0
  %2075 = vmatprep.subr.mxu0 0.0
  %2076 = vmatpush1.msra.mxu0 %v2055
  %2077 = vmatprep.subr.mxu0 0.0
  %2078 = vmatpush1.msra.mxu0 %v2040
  %2079 = vmatprep.subr.mxu0 0.0
  %2080 = vmatpush1.msra.mxu0 %v2039
  %2081 = vmatprep.subr.mxu0 0.0
  %2082 = vmatpush1.msra.mxu0 %v2038
  %2083 = vmatprep.subr.mxu0 0.0
  %2084 = vmatpush1.msra.mxu0 %v2037
  %2085 = vmatprep.subr.mxu0 0.0
  %2086 = vmatpush1.msra.mxu0 %v2036
  %2087 = vmatprep.subr.mxu0 0.0
  %2088 = vmatpush1.msra.mxu0 %v2035
  %2089 = vmatprep.subr.mxu0 0.0
  %2090 = vmatpush2.msra.mxu0 0.0
  %2091 = vmatprep.subr.mxu0 0.0
  %2092 = vmatpush2.msra.mxu0 0.0
  %2093 = vmatprep.subr.mxu0 0.0
  %2094 = vmatpush2.msra.mxu0 0.0
  %2095 = vmatprep.subr.mxu0 0.0
  %2096 = vmatpush2.msra.mxu0 0.0
  %2097 = vmatprep.subr.mxu0 0.0
  %2098 = vmatpush2.msra.mxu0 0.0
  %2099 = vmatprep.subr.mxu0 0.0
  %2100 = vmatpush2.msra.mxu0 0.0
  %2101 = vmatprep.subr.mxu0 0.0
  %2102 = vmatpush2.msra.mxu0 0.0
  %2103 = vmatprep.subr.mxu0 0.0
  %2104 = vmatpush2.msra.mxu0 0.0
  %2105 = vmatprep.subr.mxu0 0.0
  %2106 = vmatpush2.msra.mxu0 0.0
  %2107 = vmatprep.subr.mxu0 0.0
  %2108 = vmatpush2.msra.mxu0 0.0
  %2109 = vmatprep.subr.mxu0 0.0
  %2110 = vmatpush2.msra.mxu0 0.0
  %2111 = vmatprep.subr.mxu0 0.0
  %2112 = vmatpush2.msra.mxu0 0.0
  %2113 = vmatprep.subr.mxu0 0.0
  %2114 = vmatpush2.msra.mxu0 0.0
  %2115 = vmatprep.subr.mxu0 0.0
  %2116 = vmatpush2.msra.mxu0 0.0
  %2117 = vmatprep.subr.mxu0 0.0
  %2118 = vmatpush2.msra.mxu0 0.0
  %2119 = vmatprep.subr.mxu0 0.0
  %2120 = vmatpush2.msra.mxu0 0.0
  %2121 = vmatprep.mubr.f32.mxu0 0.0
  %2122 = vmatmul.mubr.f32.gmra.mxu0 %v2043
  %v2123 = vpop.f32.mrf.mxu0
  %v2124 = vadd.f32 0.0, %v2123
  %v2125 = vpop.f32.mrf.mxu0
  %2126 = vmatprep.mubr.f32.mxu0 0.0
  %2127 = vmatmul.mubr.f32.gmra.mxu0 %v2046
  %v2128 = vpop.f32.mrf.mxu0
  %v2129 = vadd.f32 0.0, %v2128
  %v2130 = vpop.f32.mrf.mxu0
  %2131 = vmatprep.mubr.f32.mxu0 0.0
  %2132 = vmatmul.mubr.f32.gmra.mxu0 %v2049
  %v2133 = vpop.f32.mrf.mxu0
  %v2134 = vadd.f32 0.0, %v2133
  %v2135 = vpop.f32.mrf.mxu0
  %2136 = vmatprep.mubr.f32.mxu0 0.0
  %2137 = vmatmul.mubr.f32.gmra.mxu0 %v2052
  %v2138 = vpop.f32.mrf.mxu0
  %v2139 = vadd.f32 0.0, %v2138
  %v2140 = vpop.f32.mrf.mxu0
  %2141 = vdwg.mxu0
  %v2142 = vadd.f32 %v2030, %v2124
  %v2143 = vadd.f32 %v2031, %v2129
  %v2144 = vadd.f32 %v2032, %v2134
  %v2145 = vadd.f32 %v2033, %v2139
  %s2146 = scalar_lea.vmem %s5, 280
  %v2147 = vld [vmem:[%s2146] sm:$0xff]
  %v2148 = vld [vmem:[%s2146 + $0x8] sm:$0xff]
  %v2149 = vld [vmem:[%s2146 + $0x10] sm:$0xff]
  %v2150 = vld [vmem:[%s2146 + $0x18] sm:$0xff]
  %v2151 = vld [vmem:[%s2146 + $0x20] sm:$0xff]
  %v2152 = vld [vmem:[%s2146 + $0x28] sm:$0xff]
  %v2153 = vld [vmem:[%s2146 + $0x30] sm:$0x1]
  %v2155 = vsel %vm784, %v1532, 0
  %v2158 = vsel %vm784, %v1535, 0
  %v2161 = vsel %vm784, %v1540, 0
  %v2164 = vsel %vm784, %v1543, 0
  %v2167 = vsel %vm1621, %v2153, 0
  %2169 = vmatprep.subr.mxu0 0.0
  %2170 = vmatpush1.msra.mxu0 0.0
  %2171 = vmatprep.subr.mxu0 0.0
  %2172 = vmatpush1.msra.mxu0 0.0
  %2173 = vmatprep.subr.mxu0 0.0
  %2174 = vmatpush1.msra.mxu0 0.0
  %2175 = vmatprep.subr.mxu0 0.0
  %2176 = vmatpush1.msra.mxu0 0.0
  %2177 = vmatprep.subr.mxu0 0.0
  %2178 = vmatpush1.msra.mxu0 0.0
  %2179 = vmatprep.subr.mxu0 0.0
  %2180 = vmatpush1.msra.mxu0 0.0
  %2181 = vmatprep.subr.mxu0 0.0
  %2182 = vmatpush1.msra.mxu0 0.0
  %2183 = vmatprep.subr.mxu0 0.0
  %2184 = vmatpush1.msra.mxu0 0.0
  %2185 = vmatprep.subr.mxu0 0.0
  %2186 = vmatpush1.msra.mxu0 0.0
  %2187 = vmatprep.subr.mxu0 0.0
  %2188 = vmatpush1.msra.mxu0 %v2167
  %2189 = vmatprep.subr.mxu0 0.0
  %2190 = vmatpush1.msra.mxu0 %v2152
  %2191 = vmatprep.subr.mxu0 0.0
  %2192 = vmatpush1.msra.mxu0 %v2151
  %2193 = vmatprep.subr.mxu0 0.0
  %2194 = vmatpush1.msra.mxu0 %v2150
  %2195 = vmatprep.subr.mxu0 0.0
  %2196 = vmatpush1.msra.mxu0 %v2149
  %2197 = vmatprep.subr.mxu0 0.0
  %2198 = vmatpush1.msra.mxu0 %v2148
  %2199 = vmatprep.subr.mxu0 0.0
  %2200 = vmatpush1.msra.mxu0 %v2147
  %2201 = vmatprep.subr.mxu0 0.0
  %2202 = vmatpush2.msra.mxu0 0.0
  %2203 = vmatprep.subr.mxu0 0.0
  %2204 = vmatpush2.msra.mxu0 0.0
  %2205 = vmatprep.subr.mxu0 0.0
  %2206 = vmatpush2.msra.mxu0 0.0
  %2207 = vmatprep.subr.mxu0 0.0
  %2208 = vmatpush2.msra.mxu0 0.0
  %2209 = vmatprep.subr.mxu0 0.0
  %2210 = vmatpush2.msra.mxu0 0.0
  %2211 = vmatprep.subr.mxu0 0.0
  %2212 = vmatpush2.msra.mxu0 0.0
  %2213 = vmatprep.subr.mxu0 0.0
  %2214 = vmatpush2.msra.mxu0 0.0
  %2215 = vmatprep.subr.mxu0 0.0
  %2216 = vmatpush2.msra.mxu0 0.0
  %2217 = vmatprep.subr.mxu0 0.0
  %2218 = vmatpush2.msra.mxu0 0.0
  %2219 = vmatprep.subr.mxu0 0.0
  %2220 = vmatpush2.msra.mxu0 0.0
  %2221 = vmatprep.subr.mxu0 0.0
  %2222 = vmatpush2.msra.mxu0 0.0
  %2223 = vmatprep.subr.mxu0 0.0
  %2224 = vmatpush2.msra.mxu0 0.0
  %2225 = vmatprep.subr.mxu0 0.0
  %2226 = vmatpush2.msra.mxu0 0.0
  %2227 = vmatprep.subr.mxu0 0.0
  %2228 = vmatpush2.msra.mxu0 0.0
  %2229 = vmatprep.subr.mxu0 0.0
  %2230 = vmatpush2.msra.mxu0 0.0
  %2231 = vmatprep.subr.mxu0 0.0
  %2232 = vmatpush2.msra.mxu0 0.0
  %2233 = vmatprep.mubr.f32.mxu0 0.0
  %2234 = vmatmul.mubr.f32.gmra.mxu0 %v2155
  %v2235 = vpop.f32.mrf.mxu0
  %v2236 = vadd.f32 0.0, %v2235
  %v2237 = vpop.f32.mrf.mxu0
  %2238 = vmatprep.mubr.f32.mxu0 0.0
  %2239 = vmatmul.mubr.f32.gmra.mxu0 %v2158
  %v2240 = vpop.f32.mrf.mxu0
  %v2241 = vadd.f32 0.0, %v2240
  %v2242 = vpop.f32.mrf.mxu0
  %2243 = vmatprep.mubr.f32.mxu0 0.0
  %2244 = vmatmul.mubr.f32.gmra.mxu0 %v2161
  %v2245 = vpop.f32.mrf.mxu0
  %v2246 = vadd.f32 0.0, %v2245
  %v2247 = vpop.f32.mrf.mxu0
  %2248 = vmatprep.mubr.f32.mxu0 0.0
  %2249 = vmatmul.mubr.f32.gmra.mxu0 %v2164
  %v2250 = vpop.f32.mrf.mxu0
  %v2251 = vadd.f32 0.0, %v2250
  %v2252 = vpop.f32.mrf.mxu0
  %2253 = vdwg.mxu0
  %v2254 = vadd.f32 %v2142, %v2236
  %v2255 = vadd.f32 %v2143, %v2241
  %v2256 = vadd.f32 %v2144, %v2246
  %v2257 = vadd.f32 %v2145, %v2251
  %s2258 = scalar_lea.vmem %s5, 336
  %v2259 = vld [vmem:[%s2258] sm:$0xff]
  %v2260 = vld [vmem:[%s2258 + $0x8] sm:$0xff]
  %v2261 = vld [vmem:[%s2258 + $0x10] sm:$0xff]
  %v2262 = vld [vmem:[%s2258 + $0x18] sm:$0xff]
  %v2263 = vld [vmem:[%s2258 + $0x20] sm:$0xff]
  %v2264 = vld [vmem:[%s2258 + $0x28] sm:$0xff]
  %v2265 = vld [vmem:[%s2258 + $0x30] sm:$0x1]
  %v2267 = vsel %vm784, %v1548, 0
  %v2270 = vsel %vm784, %v1551, 0
  %v2273 = vsel %vm784, %v1556, 0
  %v2276 = vsel %vm784, %v1559, 0
  %v2279 = vsel %vm1621, %v2265, 0
  %2281 = vmatprep.subr.mxu0 0.0
  %2282 = vmatpush1.msra.mxu0 0.0
  %2283 = vmatprep.subr.mxu0 0.0
  %2284 = vmatpush1.msra.mxu0 0.0
  %2285 = vmatprep.subr.mxu0 0.0
  %2286 = vmatpush1.msra.mxu0 0.0
  %2287 = vmatprep.subr.mxu0 0.0
  %2288 = vmatpush1.msra.mxu0 0.0
  %2289 = vmatprep.subr.mxu0 0.0
  %2290 = vmatpush1.msra.mxu0 0.0
  %2291 = vmatprep.subr.mxu0 0.0
  %2292 = vmatpush1.msra.mxu0 0.0
  %2293 = vmatprep.subr.mxu0 0.0
  %2294 = vmatpush1.msra.mxu0 0.0
  %2295 = vmatprep.subr.mxu0 0.0
  %2296 = vmatpush1.msra.mxu0 0.0
  %2297 = vmatprep.subr.mxu0 0.0
  %2298 = vmatpush1.msra.mxu0 0.0
  %2299 = vmatprep.subr.mxu0 0.0
  %2300 = vmatpush1.msra.mxu0 %v2279
  %2301 = vmatprep.subr.mxu0 0.0
  %2302 = vmatpush1.msra.mxu0 %v2264
  %2303 = vmatprep.subr.mxu0 0.0
  %2304 = vmatpush1.msra.mxu0 %v2263
  %2305 = vmatprep.subr.mxu0 0.0
  %2306 = vmatpush1.msra.mxu0 %v2262
  %2307 = vmatprep.subr.mxu0 0.0
  %2308 = vmatpush1.msra.mxu0 %v2261
  %2309 = vmatprep.subr.mxu0 0.0
  %2310 = vmatpush1.msra.mxu0 %v2260
  %2311 = vmatprep.subr.mxu0 0.0
  %2312 = vmatpush1.msra.mxu0 %v2259
  %2313 = vmatprep.subr.mxu0 0.0
  %2314 = vmatpush2.msra.mxu0 0.0
  %2315 = vmatprep.subr.mxu0 0.0
  %2316 = vmatpush2.msra.mxu0 0.0
  %2317 = vmatprep.subr.mxu0 0.0
  %2318 = vmatpush2.msra.mxu0 0.0
  %2319 = vmatprep.subr.mxu0 0.0
  %2320 = vmatpush2.msra.mxu0 0.0
  %2321 = vmatprep.subr.mxu0 0.0
  %2322 = vmatpush2.msra.mxu0 0.0
  %2323 = vmatprep.subr.mxu0 0.0
  %2324 = vmatpush2.msra.mxu0 0.0
  %2325 = vmatprep.subr.mxu0 0.0
  %2326 = vmatpush2.msra.mxu0 0.0
  %2327 = vmatprep.subr.mxu0 0.0
  %2328 = vmatpush2.msra.mxu0 0.0
  %2329 = vmatprep.subr.mxu0 0.0
  %2330 = vmatpush2.msra.mxu0 0.0
  %2331 = vmatprep.subr.mxu0 0.0
  %2332 = vmatpush2.msra.mxu0 0.0
  %2333 = vmatprep.subr.mxu0 0.0
  %2334 = vmatpush2.msra.mxu0 0.0
  %2335 = vmatprep.subr.mxu0 0.0
  %2336 = vmatpush2.msra.mxu0 0.0
  %2337 = vmatprep.subr.mxu0 0.0
  %2338 = vmatpush2.msra.mxu0 0.0
  %2339 = vmatprep.subr.mxu0 0.0
  %2340 = vmatpush2.msra.mxu0 0.0
  %2341 = vmatprep.subr.mxu0 0.0
  %2342 = vmatpush2.msra.mxu0 0.0
  %2343 = vmatprep.subr.mxu0 0.0
  %2344 = vmatpush2.msra.mxu0 0.0
  %2345 = vmatprep.mubr.f32.mxu0 0.0
  %2346 = vmatmul.mubr.f32.gmra.mxu0 %v2267
  %v2347 = vpop.f32.mrf.mxu0
  %v2348 = vadd.f32 0.0, %v2347
  %v2349 = vpop.f32.mrf.mxu0
  %2350 = vmatprep.mubr.f32.mxu0 0.0
  %2351 = vmatmul.mubr.f32.gmra.mxu0 %v2270
  %v2352 = vpop.f32.mrf.mxu0
  %v2353 = vadd.f32 0.0, %v2352
  %v2354 = vpop.f32.mrf.mxu0
  %2355 = vmatprep.mubr.f32.mxu0 0.0
  %2356 = vmatmul.mubr.f32.gmra.mxu0 %v2273
  %v2357 = vpop.f32.mrf.mxu0
  %v2358 = vadd.f32 0.0, %v2357
  %v2359 = vpop.f32.mrf.mxu0
  %2360 = vmatprep.mubr.f32.mxu0 0.0
  %2361 = vmatmul.mubr.f32.gmra.mxu0 %v2276
  %v2362 = vpop.f32.mrf.mxu0
  %v2363 = vadd.f32 0.0, %v2362
  %v2364 = vpop.f32.mrf.mxu0
  %2365 = vdwg.mxu0
  %v2366 = vadd.f32 %v2254, %v2348
  %v2367 = vadd.f32 %v2255, %v2353
  %v2368 = vadd.f32 %v2256, %v2358
  %v2369 = vadd.f32 %v2257, %v2363
  %s2370 = scalar_lea.vmem %s5, 392
  %v2371 = vld [vmem:[%s2370] sm:$0xff]
  %v2372 = vld [vmem:[%s2370 + $0x8] sm:$0xff]
  %v2373 = vld [vmem:[%s2370 + $0x10] sm:$0xff]
  %v2374 = vld [vmem:[%s2370 + $0x18] sm:$0xff]
  %v2375 = vld [vmem:[%s2370 + $0x20] sm:$0xff]
  %v2376 = vld [vmem:[%s2370 + $0x28] sm:$0xff]
  %v2377 = vld [vmem:[%s2370 + $0x30] sm:$0x1]
  %v2379 = vsel %vm784, %v1564, 0
  %v2382 = vsel %vm784, %v1567, 0
  %v2385 = vsel %vm784, %v1572, 0
  %v2388 = vsel %vm784, %v1575, 0
  %v2391 = vsel %vm1621, %v2377, 0
  %2393 = vmatprep.subr.mxu0 0.0
  %2394 = vmatpush1.msra.mxu0 0.0
  %2395 = vmatprep.subr.mxu0 0.0
  %2396 = vmatpush1.msra.mxu0 0.0
  %2397 = vmatprep.subr.mxu0 0.0
  %2398 = vmatpush1.msra.mxu0 0.0
  %2399 = vmatprep.subr.mxu0 0.0
  %2400 = vmatpush1.msra.mxu0 0.0
  %2401 = vmatprep.subr.mxu0 0.0
  %2402 = vmatpush1.msra.mxu0 0.0
  %2403 = vmatprep.subr.mxu0 0.0
  %2404 = vmatpush1.msra.mxu0 0.0
  %2405 = vmatprep.subr.mxu0 0.0
  %2406 = vmatpush1.msra.mxu0 0.0
  %2407 = vmatprep.subr.mxu0 0.0
  %2408 = vmatpush1.msra.mxu0 0.0
  %2409 = vmatprep.subr.mxu0 0.0
  %2410 = vmatpush1.msra.mxu0 0.0
  %2411 = vmatprep.subr.mxu0 0.0
  %2412 = vmatpush1.msra.mxu0 %v2391
  %2413 = vmatprep.subr.mxu0 0.0
  %2414 = vmatpush1.msra.mxu0 %v2376
  %2415 = vmatprep.subr.mxu0 0.0
  %2416 = vmatpush1.msra.mxu0 %v2375
  %2417 = vmatprep.subr.mxu0 0.0
  %2418 = vmatpush1.msra.mxu0 %v2374
  %2419 = vmatprep.subr.mxu0 0.0
  %2420 = vmatpush1.msra.mxu0 %v2373
  %2421 = vmatprep.subr.mxu0 0.0
  %2422 = vmatpush1.msra.mxu0 %v2372
  %2423 = vmatprep.subr.mxu0 0.0
  %2424 = vmatpush1.msra.mxu0 %v2371
  %2425 = vmatprep.subr.mxu0 0.0
  %2426 = vmatpush2.msra.mxu0 0.0
  %2427 = vmatprep.subr.mxu0 0.0
  %2428 = vmatpush2.msra.mxu0 0.0
  %2429 = vmatprep.subr.mxu0 0.0
  %2430 = vmatpush2.msra.mxu0 0.0
  %2431 = vmatprep.subr.mxu0 0.0
  %2432 = vmatpush2.msra.mxu0 0.0
  %2433 = vmatprep.subr.mxu0 0.0
  %2434 = vmatpush2.msra.mxu0 0.0
  %2435 = vmatprep.subr.mxu0 0.0
  %2436 = vmatpush2.msra.mxu0 0.0
  %2437 = vmatprep.subr.mxu0 0.0
  %2438 = vmatpush2.msra.mxu0 0.0
  %2439 = vmatprep.subr.mxu0 0.0
  %2440 = vmatpush2.msra.mxu0 0.0
  %2441 = vmatprep.subr.mxu0 0.0
  %2442 = vmatpush2.msra.mxu0 0.0
  %2443 = vmatprep.subr.mxu0 0.0
  %2444 = vmatpush2.msra.mxu0 0.0
  %2445 = vmatprep.subr.mxu0 0.0
  %2446 = vmatpush2.msra.mxu0 0.0
  %2447 = vmatprep.subr.mxu0 0.0
  %2448 = vmatpush2.msra.mxu0 0.0
  %2449 = vmatprep.subr.mxu0 0.0
  %2450 = vmatpush2.msra.mxu0 0.0
  %2451 = vmatprep.subr.mxu0 0.0
  %2452 = vmatpush2.msra.mxu0 0.0
  %2453 = vmatprep.subr.mxu0 0.0
  %2454 = vmatpush2.msra.mxu0 0.0
  %2455 = vmatprep.subr.mxu0 0.0
  %2456 = vmatpush2.msra.mxu0 0.0
  %2457 = vmatprep.mubr.f32.mxu0 0.0
  %2458 = vmatmul.mubr.f32.gmra.mxu0 %v2379
  %v2459 = vpop.f32.mrf.mxu0
  %v2460 = vadd.f32 0.0, %v2459
  %v2461 = vpop.f32.mrf.mxu0
  %2462 = vmatprep.mubr.f32.mxu0 0.0
  %2463 = vmatmul.mubr.f32.gmra.mxu0 %v2382
  %v2464 = vpop.f32.mrf.mxu0
  %v2465 = vadd.f32 0.0, %v2464
  %v2466 = vpop.f32.mrf.mxu0
  %2467 = vmatprep.mubr.f32.mxu0 0.0
  %2468 = vmatmul.mubr.f32.gmra.mxu0 %v2385
  %v2469 = vpop.f32.mrf.mxu0
  %v2470 = vadd.f32 0.0, %v2469
  %v2471 = vpop.f32.mrf.mxu0
  %2472 = vmatprep.mubr.f32.mxu0 0.0
  %2473 = vmatmul.mubr.f32.gmra.mxu0 %v2388
  %v2474 = vpop.f32.mrf.mxu0
  %v2475 = vadd.f32 0.0, %v2474
  %v2476 = vpop.f32.mrf.mxu0
  %2477 = vdwg.mxu0
  %v2478 = vadd.f32 %v2366, %v2460
  %v2479 = vadd.f32 %v2367, %v2465
  %v2480 = vadd.f32 %v2368, %v2470
  %v2481 = vadd.f32 %v2369, %v2475
  %s2482 = scalar_lea.vmem %s5, 448
  %v2483 = vld [vmem:[%s2482] sm:$0xff]
  %v2484 = vld [vmem:[%s2482 + $0x8] sm:$0xff]
  %v2485 = vld [vmem:[%s2482 + $0x10] sm:$0xff]
  %v2486 = vld [vmem:[%s2482 + $0x18] sm:$0xff]
  %v2487 = vld [vmem:[%s2482 + $0x20] sm:$0xff]
  %v2488 = vld [vmem:[%s2482 + $0x28] sm:$0xff]
  %v2489 = vld [vmem:[%s2482 + $0x30] sm:$0x1]
  %v2491 = vsel %vm784, %v1580, 0
  %v2494 = vsel %vm784, %v1583, 0
  %v2497 = vsel %vm784, %v1588, 0
  %v2500 = vsel %vm784, %v1591, 0
  %v2503 = vsel %vm1621, %v2489, 0
  %2505 = vmatprep.subr.mxu0 0.0
  %2506 = vmatpush1.msra.mxu0 0.0
  %2507 = vmatprep.subr.mxu0 0.0
  %2508 = vmatpush1.msra.mxu0 0.0
  %2509 = vmatprep.subr.mxu0 0.0
  %2510 = vmatpush1.msra.mxu0 0.0
  %2511 = vmatprep.subr.mxu0 0.0
  %2512 = vmatpush1.msra.mxu0 0.0
  %2513 = vmatprep.subr.mxu0 0.0
  %2514 = vmatpush1.msra.mxu0 0.0
  %2515 = vmatprep.subr.mxu0 0.0
  %2516 = vmatpush1.msra.mxu0 0.0
  %2517 = vmatprep.subr.mxu0 0.0
  %2518 = vmatpush1.msra.mxu0 0.0
  %2519 = vmatprep.subr.mxu0 0.0
  %2520 = vmatpush1.msra.mxu0 0.0
  %2521 = vmatprep.subr.mxu0 0.0
  %2522 = vmatpush1.msra.mxu0 0.0
  %2523 = vmatprep.subr.mxu0 0.0
  %2524 = vmatpush1.msra.mxu0 %v2503
  %2525 = vmatprep.subr.mxu0 0.0
  %2526 = vmatpush1.msra.mxu0 %v2488
  %2527 = vmatprep.subr.mxu0 0.0
  %2528 = vmatpush1.msra.mxu0 %v2487
  %2529 = vmatprep.subr.mxu0 0.0
  %2530 = vmatpush1.msra.mxu0 %v2486
  %2531 = vmatprep.subr.mxu0 0.0
  %2532 = vmatpush1.msra.mxu0 %v2485
  %2533 = vmatprep.subr.mxu0 0.0
  %2534 = vmatpush1.msra.mxu0 %v2484
  %2535 = vmatprep.subr.mxu0 0.0
  %2536 = vmatpush1.msra.mxu0 %v2483
  %2537 = vmatprep.subr.mxu0 0.0
  %2538 = vmatpush2.msra.mxu0 0.0
  %2539 = vmatprep.subr.mxu0 0.0
  %2540 = vmatpush2.msra.mxu0 0.0
  %2541 = vmatprep.subr.mxu0 0.0
  %2542 = vmatpush2.msra.mxu0 0.0
  %2543 = vmatprep.subr.mxu0 0.0
  %2544 = vmatpush2.msra.mxu0 0.0
  %2545 = vmatprep.subr.mxu0 0.0
  %2546 = vmatpush2.msra.mxu0 0.0
  %2547 = vmatprep.subr.mxu0 0.0
  %2548 = vmatpush2.msra.mxu0 0.0
  %2549 = vmatprep.subr.mxu0 0.0
  %2550 = vmatpush2.msra.mxu0 0.0
  %2551 = vmatprep.subr.mxu0 0.0
  %2552 = vmatpush2.msra.mxu0 0.0
  %2553 = vmatprep.subr.mxu0 0.0
  %2554 = vmatpush2.msra.mxu0 0.0
  %2555 = vmatprep.subr.mxu0 0.0
  %2556 = vmatpush2.msra.mxu0 0.0
  %2557 = vmatprep.subr.mxu0 0.0
  %2558 = vmatpush2.msra.mxu0 0.0
  %2559 = vmatprep.subr.mxu0 0.0
  %2560 = vmatpush2.msra.mxu0 0.0
  %2561 = vmatprep.subr.mxu0 0.0
  %2562 = vmatpush2.msra.mxu0 0.0
  %2563 = vmatprep.subr.mxu0 0.0
  %2564 = vmatpush2.msra.mxu0 0.0
  %2565 = vmatprep.subr.mxu0 0.0
  %2566 = vmatpush2.msra.mxu0 0.0
  %2567 = vmatprep.subr.mxu0 0.0
  %2568 = vmatpush2.msra.mxu0 0.0
  %2569 = vmatprep.mubr.f32.mxu0 0.0
  %2570 = vmatmul.mubr.f32.gmra.mxu0 %v2491
  %v2571 = vpop.f32.mrf.mxu0
  %v2572 = vadd.f32 0.0, %v2571
  %v2573 = vpop.f32.mrf.mxu0
  %2574 = vmatprep.mubr.f32.mxu0 0.0
  %2575 = vmatmul.mubr.f32.gmra.mxu0 %v2494
  %v2576 = vpop.f32.mrf.mxu0
  %v2577 = vadd.f32 0.0, %v2576
  %v2578 = vpop.f32.mrf.mxu0
  %2579 = vmatprep.mubr.f32.mxu0 0.0
  %2580 = vmatmul.mubr.f32.gmra.mxu0 %v2497
  %v2581 = vpop.f32.mrf.mxu0
  %v2582 = vadd.f32 0.0, %v2581
  %v2583 = vpop.f32.mrf.mxu0
  %2584 = vmatprep.mubr.f32.mxu0 0.0
  %2585 = vmatmul.mubr.f32.gmra.mxu0 %v2500
  %v2586 = vpop.f32.mrf.mxu0
  %v2587 = vadd.f32 0.0, %v2586
  %v2588 = vpop.f32.mrf.mxu0
  %2589 = vdwg.mxu0
  %v2590 = vadd.f32 %v2478, %v2572
  %v2591 = vadd.f32 %v2479, %v2577
  %v2592 = vadd.f32 %v2480, %v2582
  %v2593 = vadd.f32 %v2481, %v2587
  %2594 = vst.msk [vmem:[%s6] sm:$0xff] %vm784, %v2590
  %2595 = vst.msk [vmem:[%s6 + $0x8] sm:$0xff] %vm784, %v2591
  %2596 = vst.msk [vmem:[%s6 + $0x10] sm:$0xff] %vm784, %v2592
  %2597 = vst.msk [vmem:[%s6 + $0x18] sm:$0xff] %vm784, %v2593
  // Predicated region
  $region26: #{model_forward.1} parent=0 // pred_check
    _
  $region27: #{model_forward.1} parent=0 // pred_check_branch
    %2599 = sbr.rel (0) target = $region29
  $region28: #{model_forward.1} parent=0 // pred_region
    _
  $region29: #{model_forward.1} parent=0 // pred_fallthru
    _
  // Predicated region
  $region30: #{model_forward.1} parent=0 // pred_check
    _
  $region31: #{model_forward.1} parent=0 // pred_check_branch
    %2601 = sbr.rel (0) target = $region33
  $region32: #{model_forward.1} parent=0 // pred_region
    _
  $region33: #{model_forward.1} parent=0 // pred_fallthru
    _

</llo_original>
